<compile_context>
chip_gen: v5e
topology: v5e:2x2
jax: 0.10.0
libtpu: 0.0.40
codegen_flags: <defaults>
</compile_context>

<pallas_src>
import jax
import jax.numpy as jnp
from jax import lax
from jax.experimental import pallas as pl
from jax.experimental.pallas import tpu as pltpu

_COMPILER_PARAMS = pltpu.CompilerParams(
    dimension_semantics=("parallel",),
    vmem_limit_bytes=32 * 1024 * 1024,
)


# ----------------------------- Pallas kernels ------------------------------ #
def _conv_tanh_pool_kernel(p00_ref, p01_ref, p10_ref, p11_ref, w_ref, b_ref,
                           o_ref):
    """out = max over 4 pool corners of tanh(corner_patches @ w + b)."""
    w = w_ref[...]                       # (K_pad, Cout) bf16, VMEM-resident
    b = b_ref[...]                       # (1, Cout) f32

    def corner(p_ref):
        acc = jnp.dot(p_ref[...], w, preferred_element_type=jnp.float32)
        return jnp.tanh(acc + b)         # keep VPU/EUP math in f32 (v5e safe)

    m = jnp.maximum(jnp.maximum(corner(p00_ref), corner(p01_ref)),
                    jnp.maximum(corner(p10_ref), corner(p11_ref)))
    o_ref[...] = m.astype(o_ref.dtype)


def _fc_stack_kernel(x_ref, w3_ref, b3_ref, w4_ref, b4_ref, w5_ref, b5_ref,
                     o_ref):
    """out = sigmoid(sigmoid(x@w3+b3)@w4+b4)@w5+b5 with weights VMEM-resident.

    Weights are zero-padded to 128 lanes/rows; padded lanes of the hidden
    activations (sigmoid(0)=0.5) hit only zero weight rows, so they are inert.
    """
    h = jnp.dot(x_ref[...], w3_ref[...], preferred_element_type=jnp.float32)
    h = jax.nn.sigmoid(h + b3_ref[...])
    h = jnp.dot(h.astype(jnp.bfloat16), w4_ref[...],
                preferred_element_type=jnp.float32)
    h = jax.nn.sigmoid(h + b4_ref[...])
    h = jnp.dot(h.astype(jnp.bfloat16), w5_ref[...],
                preferred_element_type=jnp.float32)
    o_ref[...] = (h + b5_ref[...]).astype(o_ref.dtype)


# ------------------------------ call wrappers ------------------------------ #
def _full_spec(arr):
    return pl.BlockSpec(arr.shape, lambda i: (0, 0))


def conv_tanh_pool(corners, w, b, cout, tile_rows=2048):
    """Fused conv(5x5)+bias+tanh+2x2 maxpool over 4 corner im2col slabs."""
    r, kp = corners[0].shape
    tm = r if r <= tile_rows else tile_rows          # full-dim or 8/16-aligned
    return pl.pallas_call(
        _conv_tanh_pool_kernel,
        out_shape=jax.ShapeDtypeStruct((r, cout), jnp.bfloat16),
        grid=(pl.cdiv(r, tm),),
        in_specs=[pl.BlockSpec((tm, kp), lambda i: (i, 0)) for _ in range(4)]
        + [_full_spec(w), _full_spec(b)],
        out_specs=pl.BlockSpec((tm, cout), lambda i: (i, 0)),
        compiler_params=_COMPILER_PARAMS,
    )(*corners, w, b)


def fc_stack(feat, w3, b3, w4, b4, w5, b5, num_classes=10, tile_rows=256):
    """Fused fc1+sigmoid+fc2+sigmoid+fc3; lane-dense (N,128) output, sliced once."""
    n, k = feat.shape
    tb = n if n <= tile_rows else tile_rows
    out = pl.pallas_call(
        _fc_stack_kernel,
        out_shape=jax.ShapeDtypeStruct((n, w5.shape[1]), jnp.float32),
        grid=(pl.cdiv(n, tb),),
        in_specs=[pl.BlockSpec((tb, k), lambda i: (i, 0)),
                  _full_spec(w3), _full_spec(b3),
                  _full_spec(w4), _full_spec(b4),
                  _full_spec(w5), _full_spec(b5)],
        out_specs=pl.BlockSpec((tb, w5.shape[1]), lambda i: (i, 0)),
        compiler_params=_COMPILER_PARAMS,
    )(feat, w3, b3, w4, b4, w5, b5)
    return out[:, :num_classes]


# ------------------------------- JAX glue ---------------------------------- #
def _corner_patches(x_nhwc, k, k_pad):
    """Per 2x2-pool corner: im2col patches of the stride-2-subsampled conv grid.

    Returns 4 slabs of shape (N*Hh*Wh, k_pad) with feature order (ki, kj, c_in)
    zero-padded from k*k*C to k_pad, and the pooled spatial size (Hh, Wh).
    """
    n, h, w, c = x_nhwc.shape
    ho, wo = h - k + 1, w - k + 1           # conv output (stride 1, VALID)
    hh, wh = ho // 2, wo // 2               # pooled output
    slabs = []
    for di in (0, 1):
        for dj in (0, 1):
            cols = []
            for ki in range(k):
                for kj in range(k):
                    i0, j0 = di + ki, dj + kj
                    cols.append(
                        x_nhwc[:, i0:i0 + 2 * hh - 1:2, j0:j0 + 2 * wh - 1:2, :])
            pad = k_pad - k * k * c
            if pad:
                cols.append(jnp.zeros((n, hh, wh, pad), x_nhwc.dtype))
            slabs.append(
                jnp.concatenate(cols, axis=-1).reshape(n * hh * wh, k_pad))
    return slabs, (hh, wh)


def init_params(key):
    ks = jax.random.split(key, 10)

    def u(k, shape, fan_in):
        bound = 1.0 / jnp.sqrt(jnp.float32(fan_in))
        return jax.random.uniform(k, shape, jnp.float32, -bound, bound)

    return {
        "w1": u(ks[0], (5, 5, 1, 6), 25),      # HWIO (conv1)
        "b1": u(ks[1], (6,), 25),
        "w2": u(ks[2], (5, 5, 6, 16), 150),    # HWIO (conv2)
        "b2": u(ks[3], (16,), 150),
        "w3": u(ks[4], (400, 120), 400),       # rows in PyTorch (c,h,w) order
        "b3": u(ks[5], (120,), 400),
        "w4": u(ks[6], (120, 84), 120),
        "b4": u(ks[7], (84,), 120),
        "w5": u(ks[8], (84, 10), 84),
        "b5": u(ks[9], (10,), 84),
    }


def prepare_params(p):
    """One-time (outside jit) conversion to kernel layout: reshape/permute/pad."""
    f32, bf16 = jnp.float32, jnp.bfloat16

    def pad_rows(w2d, rows):
        return jnp.pad(w2d, ((0, rows - w2d.shape[0]), (0, 0)))

    # fc1: permute rows from PyTorch (c,h,w) flatten order to the kernel's
    # (h,w,c) order so no runtime transpose is needed before the FC stack.
    w3 = p["w3"].reshape(16, 5, 5, 120).transpose(1, 2, 0, 3).reshape(400, 120)
    return {
        "w1": pad_rows(p["w1"].reshape(25, 6), 32).astype(bf16),     # (32, 6)
        "b1": p["b1"].reshape(1, 6).astype(f32),
        "w2": pad_rows(p["w2"].reshape(150, 16), 160).astype(bf16),  # (160, 16)
        "b2": p["b2"].reshape(1, 16).astype(f32),
        "w3": jnp.pad(w3, ((0, 0), (0, 8))).astype(bf16),            # (400, 128)
        "b3": jnp.pad(p["b3"], (0, 8)).reshape(1, 128).astype(f32),
        "w4": jnp.pad(p["w4"], ((0, 8), (0, 44))).astype(bf16),      # (128, 128)
        "b4": jnp.pad(p["b4"], (0, 44)).reshape(1, 128).astype(f32),
        "w5": jnp.pad(p["w5"], ((0, 44), (0, 118))).astype(bf16),    # (128, 128)
        "b5": jnp.pad(p["b5"], (0, 118)).reshape(1, 128).astype(f32),
    }


def lenet_forward(x_nchw, kp):
    n = x_nchw.shape[0]
    x = jnp.transpose(x_nchw, (0, 2, 3, 1)).astype(jnp.bfloat16)     # NHWC bf16
    xp = jnp.pad(x, ((0, 0), (2, 2), (2, 2), (0, 0)))                # padding=2

    # conv1 (5x5, 1->6) + tanh + 2x2 maxpool, fused
    c1, (h1h, h1w) = _corner_patches(xp, 5, 32)                      # 4x(N*196,32)
    h1 = conv_tanh_pool(c1, kp["w1"], kp["b1"], 6)                   # (N*196, 6)
    h1 = h1.reshape(n, h1h, h1w, 6)                                  # (N,14,14,6)

    # conv2 (5x5, 6->16) + tanh + 2x2 maxpool, fused
    c2, (h2h, h2w) = _corner_patches(h1, 5, 160)                     # 4x(N*25,160)
    h2 = conv_tanh_pool(c2, kp["w2"], kp["b2"], 16)                  # (N*25, 16)

    # flatten: rows are (n,h,w), lanes are c -> (N,400) in (h,w,c) order,
    # matching the permuted fc1 weight rows (free reshape, no transpose).
    feat = h2.reshape(n, h2h * h2w * 16)

    return fc_stack(feat, kp["w3"], kp["b3"], kp["w4"], kp["b4"],
                    kp["w5"], kp["b5"])


def lenet_reference(x_nchw, p):
    """Pure-JAX f32 reference with PyTorch-identical semantics."""
    dn = ("NHWC", "HWIO", "NHWC")
    x = jnp.transpose(x_nchw, (0, 2, 3, 1))
    h = jnp.tanh(lax.conv_general_dilated(x, p["w1"], (1, 1), ((2, 2), (2, 2)),
                                          dimension_numbers=dn) + p["b1"])
    h = lax.reduce_window(h, -jnp.inf, lax.max, (1, 2, 2, 1), (1, 2, 2, 1), "VALID")
    h = jnp.tanh(lax.conv_general_dilated(h, p["w2"], (1, 1), "VALID",
                                          dimension_numbers=dn) + p["b2"])
    h = lax.reduce_window(h, -jnp.inf, lax.max, (1, 2, 2, 1), (1, 2, 2, 1), "VALID")
    feat = jnp.transpose(h, (0, 3, 1, 2)).reshape(x.shape[0], 400)
    h = jax.nn.sigmoid(feat @ p["w3"] + p["b3"])
    h = jax.nn.sigmoid(h @ p["w4"] + p["b4"])
    return h @ p["w5"] + p["b5"]


if __name__ == "__main__":
    key = jax.random.PRNGKey(0)
    kx, kparam = jax.random.split(key)
    x = jax.random.normal(kx, (2, 1, 28, 28), jnp.float32)   # NCHW like PyTorch
    params = init_params(kparam)
    kernel_params = prepare_params(params)                   # one-time, outside jit

    out = jax.jit(lenet_forward)(x, kernel_params)
    out = jax.block_until_ready(out)

    assert out.shape == (2, 10), out.shape
    if not bool(jnp.isfinite(out).all()):
        raise RuntimeError("non-finite output from Pallas LeNet")

    ref = lenet_reference(x, params)
    err = float(jnp.max(jnp.abs(out - ref)))
    # bf16 MXU operands (f32 accumulation) -> bf16-level agreement vs f32 ref.
    if err > 5e-2:
        raise RuntimeError(f"Pallas output mismatch vs reference, max abs err = {err}")

    print("KERNEL_OK")
</pallas_src>

<mosaic_0001>
module attributes {stable_mosaic.version = 11 : i64} {
  func.func @_conv_tanh_pool_kernel(%arg0: i32, %arg1: memref<392x32xbf16, #tpu.memory_space<vmem>>, %arg2: memref<392x32xbf16, #tpu.memory_space<vmem>>, %arg3: memref<392x32xbf16, #tpu.memory_space<vmem>>, %arg4: memref<392x32xbf16, #tpu.memory_space<vmem>>, %arg5: memref<32x6xbf16, #tpu.memory_space<vmem>>, %arg6: memref<1x6xf32, #tpu.memory_space<vmem>>, %arg7: memref<392x6xbf16, #tpu.memory_space<vmem>>) attributes {dimension_semantics = [#tpu.dimension_semantics<parallel>], iteration_bounds = array<i64: 1>, scalar_prefetch = 0 : i64, scratch_operands = 0 : i64, tpu.core_type = #tpu.core_type<tc>, window_params = [{transform_indices = @transform_0, window_bounds = array<i64: 392, 32>}, {transform_indices = @transform_1, window_bounds = array<i64: 392, 32>}, {transform_indices = @transform_2, window_bounds = array<i64: 392, 32>}, {transform_indices = @transform_3, window_bounds = array<i64: 392, 32>}, {pipeline_mode = #tpu.pipeline_mode<synchronous>, transform_indices = @transform_4, window_bounds = array<i64: 32, 6>}, {pipeline_mode = #tpu.pipeline_mode<synchronous>, transform_indices = @transform_5, window_bounds = array<i64: 1, 6>}, {transform_indices = @transform_6, window_bounds = array<i64: 392, 6>}]} {
    %c0 = arith.constant 0 : index
    %c0_0 = arith.constant 0 : index
    %0 = vector.load %arg5[%c0, %c0_0] : memref<32x6xbf16, #tpu.memory_space<vmem>>, vector<32x6xbf16>
    %c0_1 = arith.constant 0 : index
    %c0_2 = arith.constant 0 : index
    %1 = vector.load %arg6[%c0_1, %c0_2] : memref<1x6xf32, #tpu.memory_space<vmem>>, vector<1x6xf32>
    %c0_3 = arith.constant 0 : index
    %c0_4 = arith.constant 0 : index
    %2 = vector.load %arg1[%c0_3, %c0_4] : memref<392x32xbf16, #tpu.memory_space<vmem>>, vector<392x32xbf16>
    %cst = arith.constant dense<0.000000e+00> : vector<392x6xf32>
    %3 = tpu.matmul %2, %0, %cst {dimension_numbers = #tpu.dot_dimension_numbers<[1], [0], [0], [1], [0, 0, 1, 1], [], []>} : vector<392x32xbf16>, vector<32x6xbf16>, vector<392x6xf32> -> vector<392x6xf32>
    %4 = vector.broadcast %1 : vector<1x6xf32> to vector<392x6xf32>
    %5 = arith.addf %3, %4 : vector<392x6xf32>
    %6 = math.tanh %5 : vector<392x6xf32>
    %c0_5 = arith.constant 0 : index
    %c0_6 = arith.constant 0 : index
    %7 = vector.load %arg2[%c0_5, %c0_6] : memref<392x32xbf16, #tpu.memory_space<vmem>>, vector<392x32xbf16>
    %cst_7 = arith.constant dense<0.000000e+00> : vector<392x6xf32>
    %8 = tpu.matmul %7, %0, %cst_7 {dimension_numbers = #tpu.dot_dimension_numbers<[1], [0], [0], [1], [0, 0, 1, 1], [], []>} : vector<392x32xbf16>, vector<32x6xbf16>, vector<392x6xf32> -> vector<392x6xf32>
    %9 = vector.broadcast %1 : vector<1x6xf32> to vector<392x6xf32>
    %10 = arith.addf %8, %9 : vector<392x6xf32>
    %11 = math.tanh %10 : vector<392x6xf32>
    %12 = arith.maximumf %6, %11 : vector<392x6xf32>
    %c0_8 = arith.constant 0 : index
    %c0_9 = arith.constant 0 : index
    %13 = vector.load %arg3[%c0_8, %c0_9] : memref<392x32xbf16, #tpu.memory_space<vmem>>, vector<392x32xbf16>
    %cst_10 = arith.constant dense<0.000000e+00> : vector<392x6xf32>
    %14 = tpu.matmul %13, %0, %cst_10 {dimension_numbers = #tpu.dot_dimension_numbers<[1], [0], [0], [1], [0, 0, 1, 1], [], []>} : vector<392x32xbf16>, vector<32x6xbf16>, vector<392x6xf32> -> vector<392x6xf32>
    %15 = vector.broadcast %1 : vector<1x6xf32> to vector<392x6xf32>
    %16 = arith.addf %14, %15 : vector<392x6xf32>
    %17 = math.tanh %16 : vector<392x6xf32>
    %c0_11 = arith.constant 0 : index
    %c0_12 = arith.constant 0 : index
    %18 = vector.load %arg4[%c0_11, %c0_12] : memref<392x32xbf16, #tpu.memory_space<vmem>>, vector<392x32xbf16>
    %cst_13 = arith.constant dense<0.000000e+00> : vector<392x6xf32>
    %19 = tpu.matmul %18, %0, %cst_13 {dimension_numbers = #tpu.dot_dimension_numbers<[1], [0], [0], [1], [0, 0, 1, 1], [], []>} : vector<392x32xbf16>, vector<32x6xbf16>, vector<392x6xf32> -> vector<392x6xf32>
    %20 = vector.broadcast %1 : vector<1x6xf32> to vector<392x6xf32>
    %21 = arith.addf %19, %20 : vector<392x6xf32>
    %22 = math.tanh %21 : vector<392x6xf32>
    %23 = arith.maximumf %17, %22 : vector<392x6xf32>
    %24 = arith.maximumf %12, %23 : vector<392x6xf32>
    %25 = arith.truncf %24 : vector<392x6xf32> to vector<392x6xbf16>
    %c0_14 = arith.constant 0 : index
    %c0_15 = arith.constant 0 : index
    %26 = vector.load %arg7[%c0_14, %c0_15] : memref<392x6xbf16, #tpu.memory_space<vmem>>, vector<392x6xbf16>
    tpu.vector_store %arg7[%c0_14, %c0_15], %25 {strides = array<i32>} : memref<392x6xbf16, #tpu.memory_space<vmem>>, vector<392x6xbf16>,
    return
  }
  func.func @transform_0(%arg0: i32) -> (i32, i32) {
    %c0_i32 = arith.constant 0 : i32
    %c0_i32_0 = arith.constant 0 : i32
    return %arg0, %c0_i32 : i32, i32
  }
  func.func @transform_1(%arg0: i32) -> (i32, i32) {
    %c0_i32 = arith.constant 0 : i32
    %c0_i32_0 = arith.constant 0 : i32
    return %arg0, %c0_i32 : i32, i32
  }
  func.func @transform_2(%arg0: i32) -> (i32, i32) {
    %c0_i32 = arith.constant 0 : i32
    %c0_i32_0 = arith.constant 0 : i32
    return %arg0, %c0_i32 : i32, i32
  }
  func.func @transform_3(%arg0: i32) -> (i32, i32) {
    %c0_i32 = arith.constant 0 : i32
    %c0_i32_0 = arith.constant 0 : i32
    return %arg0, %c0_i32 : i32, i32
  }
  func.func @transform_4(%arg0: i32) -> (i32, i32) {
    %c0_i32 = arith.constant 0 : i32
    %c0_i32_0 = arith.constant 0 : i32
    %c0_i32_1 = arith.constant 0 : i32
    return %c0_i32, %c0_i32_0 : i32, i32
  }
  func.func @transform_5(%arg0: i32) -> (i32, i32) {
    %c0_i32 = arith.constant 0 : i32
    %c0_i32_0 = arith.constant 0 : i32
    %c0_i32_1 = arith.constant 0 : i32
    return %c0_i32, %c0_i32_0 : i32, i32
  }
  func.func @transform_6(%arg0: i32) -> (i32, i32) {
    %c0_i32 = arith.constant 0 : i32
    %c0_i32_0 = arith.constant 0 : i32
    return %arg0, %c0_i32 : i32, i32
  }
}

module attributes {stable_mosaic.version = 11 : i64} {
  func.func @_conv_tanh_pool_kernel(%arg0: i32, %arg1: memref<50x160xbf16, #tpu.memory_space<vmem>>, %arg2: memref<50x160xbf16, #tpu.memory_space<vmem>>, %arg3: memref<50x160xbf16, #tpu.memory_space<vmem>>, %arg4: memref<50x160xbf16, #tpu.memory_space<vmem>>, %arg5: memref<160x16xbf16, #tpu.memory_space<vmem>>, %arg6: memref<1x16xf32, #tpu.memory_space<vmem>>, %arg7: memref<50x16xbf16, #tpu.memory_space<vmem>>) attributes {dimension_semantics = [#tpu.dimension_semantics<parallel>], iteration_bounds = array<i64: 1>, scalar_prefetch = 0 : i64, scratch_operands = 0 : i64, tpu.core_type = #tpu.core_type<tc>, window_params = [{transform_indices = @transform_0, window_bounds = array<i64: 50, 160>}, {transform_indices = @transform_1, window_bounds = array<i64: 50, 160>}, {transform_indices = @transform_2, window_bounds = array<i64: 50, 160>}, {transform_indices = @transform_3, window_bounds = array<i64: 50, 160>}, {pipeline_mode = #tpu.pipeline_mode<synchronous>, transform_indices = @transform_4, window_bounds = array<i64: 160, 16>}, {pipeline_mode = #tpu.pipeline_mode<synchronous>, transform_indices = @transform_5, window_bounds = array<i64: 1, 16>}, {transform_indices = @transform_6, window_bounds = array<i64: 50, 16>}]} {
    %c0 = arith.constant 0 : index
    %c0_0 = arith.constant 0 : index
    %0 = vector.load %arg5[%c0, %c0_0] : memref<160x16xbf16, #tpu.memory_space<vmem>>, vector<160x16xbf16>
    %c0_1 = arith.constant 0 : index
    %c0_2 = arith.constant 0 : index
    %1 = vector.load %arg6[%c0_1, %c0_2] : memref<1x16xf32, #tpu.memory_space<vmem>>, vector<1x16xf32>
    %c0_3 = arith.constant 0 : index
    %c0_4 = arith.constant 0 : index
    %2 = vector.load %arg1[%c0_3, %c0_4] : memref<50x160xbf16, #tpu.memory_space<vmem>>, vector<50x160xbf16>
    %cst = arith.constant dense<0.000000e+00> : vector<50x16xf32>
    %3 = tpu.matmul %2, %0, %cst {dimension_numbers = #tpu.dot_dimension_numbers<[1], [0], [0], [1], [0, 0, 1, 1], [], []>} : vector<50x160xbf16>, vector<160x16xbf16>, vector<50x16xf32> -> vector<50x16xf32>
    %4 = vector.broadcast %1 : vector<1x16xf32> to vector<50x16xf32>
    %5 = arith.addf %3, %4 : vector<50x16xf32>
    %6 = math.tanh %5 : vector<50x16xf32>
    %c0_5 = arith.constant 0 : index
    %c0_6 = arith.constant 0 : index
    %7 = vector.load %arg2[%c0_5, %c0_6] : memref<50x160xbf16, #tpu.memory_space<vmem>>, vector<50x160xbf16>
    %cst_7 = arith.constant dense<0.000000e+00> : vector<50x16xf32>
    %8 = tpu.matmul %7, %0, %cst_7 {dimension_numbers = #tpu.dot_dimension_numbers<[1], [0], [0], [1], [0, 0, 1, 1], [], []>} : vector<50x160xbf16>, vector<160x16xbf16>, vector<50x16xf32> -> vector<50x16xf32>
    %9 = vector.broadcast %1 : vector<1x16xf32> to vector<50x16xf32>
    %10 = arith.addf %8, %9 : vector<50x16xf32>
    %11 = math.tanh %10 : vector<50x16xf32>
    %12 = arith.maximumf %6, %11 : vector<50x16xf32>
    %c0_8 = arith.constant 0 : index
    %c0_9 = arith.constant 0 : index
    %13 = vector.load %arg3[%c0_8, %c0_9] : memref<50x160xbf16, #tpu.memory_space<vmem>>, vector<50x160xbf16>
    %cst_10 = arith.constant dense<0.000000e+00> : vector<50x16xf32>
    %14 = tpu.matmul %13, %0, %cst_10 {dimension_numbers = #tpu.dot_dimension_numbers<[1], [0], [0], [1], [0, 0, 1, 1], [], []>} : vector<50x160xbf16>, vector<160x16xbf16>, vector<50x16xf32> -> vector<50x16xf32>
    %15 = vector.broadcast %1 : vector<1x16xf32> to vector<50x16xf32>
    %16 = arith.addf %14, %15 : vector<50x16xf32>
    %17 = math.tanh %16 : vector<50x16xf32>
    %c0_11 = arith.constant 0 : index
    %c0_12 = arith.constant 0 : index
    %18 = vector.load %arg4[%c0_11, %c0_12] : memref<50x160xbf16, #tpu.memory_space<vmem>>, vector<50x160xbf16>
    %cst_13 = arith.constant dense<0.000000e+00> : vector<50x16xf32>
    %19 = tpu.matmul %18, %0, %cst_13 {dimension_numbers = #tpu.dot_dimension_numbers<[1], [0], [0], [1], [0, 0, 1, 1], [], []>} : vector<50x160xbf16>, vector<160x16xbf16>, vector<50x16xf32> -> vector<50x16xf32>
    %20 = vector.broadcast %1 : vector<1x16xf32> to vector<50x16xf32>
    %21 = arith.addf %19, %20 : vector<50x16xf32>
    %22 = math.tanh %21 : vector<50x16xf32>
    %23 = arith.maximumf %17, %22 : vector<50x16xf32>
    %24 = arith.maximumf %12, %23 : vector<50x16xf32>
    %25 = arith.truncf %24 : vector<50x16xf32> to vector<50x16xbf16>
    %c0_14 = arith.constant 0 : index
    %c0_15 = arith.constant 0 : index
    %26 = vector.load %arg7[%c0_14, %c0_15] : memref<50x16xbf16, #tpu.memory_space<vmem>>, vector<50x16xbf16>
    tpu.vector_store %arg7[%c0_14, %c0_15], %25 {strides = array<i32>} : memref<50x16xbf16, #tpu.memory_space<vmem>>, vector<50x16xbf16>,
    return
  }
  func.func @transform_0(%arg0: i32) -> (i32, i32) {
    %c0_i32 = arith.constant 0 : i32
    %c0_i32_0 = arith.constant 0 : i32
    return %arg0, %c0_i32 : i32, i32
  }
  func.func @transform_1(%arg0: i32) -> (i32, i32) {
    %c0_i32 = arith.constant 0 : i32
    %c0_i32_0 = arith.constant 0 : i32
    return %arg0, %c0_i32 : i32, i32
  }
  func.func @transform_2(%arg0: i32) -> (i32, i32) {
    %c0_i32 = arith.constant 0 : i32
    %c0_i32_0 = arith.constant 0 : i32
    return %arg0, %c0_i32 : i32, i32
  }
  func.func @transform_3(%arg0: i32) -> (i32, i32) {
    %c0_i32 = arith.constant 0 : i32
    %c0_i32_0 = arith.constant 0 : i32
    return %arg0, %c0_i32 : i32, i32
  }
  func.func @transform_4(%arg0: i32) -> (i32, i32) {
    %c0_i32 = arith.constant 0 : i32
    %c0_i32_0 = arith.constant 0 : i32
    %c0_i32_1 = arith.constant 0 : i32
    return %c0_i32, %c0_i32_0 : i32, i32
  }
  func.func @transform_5(%arg0: i32) -> (i32, i32) {
    %c0_i32 = arith.constant 0 : i32
    %c0_i32_0 = arith.constant 0 : i32
    %c0_i32_1 = arith.constant 0 : i32
    return %c0_i32, %c0_i32_0 : i32, i32
  }
  func.func @transform_6(%arg0: i32) -> (i32, i32) {
    %c0_i32 = arith.constant 0 : i32
    %c0_i32_0 = arith.constant 0 : i32
    return %arg0, %c0_i32 : i32, i32
  }
}

module attributes {stable_mosaic.version = 11 : i64} {
  func.func @_fc_stack_kernel(%arg0: i32, %arg1: memref<2x400xbf16, #tpu.memory_space<vmem>>, %arg2: memref<400x128xbf16, #tpu.memory_space<vmem>>, %arg3: memref<1x128xf32, #tpu.memory_space<vmem>>, %arg4: memref<128x128xbf16, #tpu.memory_space<vmem>>, %arg5: memref<1x128xf32, #tpu.memory_space<vmem>>, %arg6: memref<128x128xbf16, #tpu.memory_space<vmem>>, %arg7: memref<1x128xf32, #tpu.memory_space<vmem>>, %arg8: memref<2x128xf32, #tpu.memory_space<vmem>>) attributes {dimension_semantics = [#tpu.dimension_semantics<parallel>], iteration_bounds = array<i64: 1>, scalar_prefetch = 0 : i64, scratch_operands = 0 : i64, tpu.core_type = #tpu.core_type<tc>, window_params = [{transform_indices = @transform_0, window_bounds = array<i64: 2, 400>}, {pipeline_mode = #tpu.pipeline_mode<synchronous>, transform_indices = @transform_1, window_bounds = array<i64: 400, 128>}, {pipeline_mode = #tpu.pipeline_mode<synchronous>, transform_indices = @transform_2, window_bounds = array<i64: 1, 128>}, {pipeline_mode = #tpu.pipeline_mode<synchronous>, transform_indices = @transform_3, window_bounds = array<i64: 128, 128>}, {pipeline_mode = #tpu.pipeline_mode<synchronous>, transform_indices = @transform_4, window_bounds = array<i64: 1, 128>}, {pipeline_mode = #tpu.pipeline_mode<synchronous>, transform_indices = @transform_5, window_bounds = array<i64: 128, 128>}, {pipeline_mode = #tpu.pipeline_mode<synchronous>, transform_indices = @transform_6, window_bounds = array<i64: 1, 128>}, {transform_indices = @transform_7, window_bounds = array<i64: 2, 128>}]} {
    %c0 = arith.constant 0 : index
    %c0_0 = arith.constant 0 : index
    %0 = vector.load %arg1[%c0, %c0_0] : memref<2x400xbf16, #tpu.memory_space<vmem>>, vector<2x400xbf16>
    %c0_1 = arith.constant 0 : index
    %c0_2 = arith.constant 0 : index
    %1 = vector.load %arg2[%c0_1, %c0_2] : memref<400x128xbf16, #tpu.memory_space<vmem>>, vector<400x128xbf16>
    %cst = arith.constant dense<0.000000e+00> : vector<2x128xf32>
    %2 = tpu.matmul %0, %1, %cst {dimension_numbers = #tpu.dot_dimension_numbers<[1], [0], [0], [1], [0, 0, 1, 1], [], []>} : vector<2x400xbf16>, vector<400x128xbf16>, vector<2x128xf32> -> vector<2x128xf32>
    %c0_3 = arith.constant 0 : index
    %c0_4 = arith.constant 0 : index
    %3 = vector.load %arg3[%c0_3, %c0_4] : memref<1x128xf32, #tpu.memory_space<vmem>>, vector<1x128xf32>
    %4 = vector.broadcast %3 : vector<1x128xf32> to vector<2x128xf32>
    %5 = arith.addf %2, %4 : vector<2x128xf32>
    %6 = arith.negf %5 : vector<2x128xf32>
    %7 = math.exp %6 : vector<2x128xf32>
    %cst_5 = arith.constant 1.000000e+00 : f32
    %8 = vector.broadcast %cst_5 : f32 to vector<2x128xf32>
    %9 = arith.addf %8, %7 : vector<2x128xf32>
    %10 = arith.divf %8, %9 : vector<2x128xf32>
    %11 = arith.truncf %10 : vector<2x128xf32> to vector<2x128xbf16>
    %c0_6 = arith.constant 0 : index
    %c0_7 = arith.constant 0 : index
    %12 = vector.load %arg4[%c0_6, %c0_7] : memref<128x128xbf16, #tpu.memory_space<vmem>>, vector<128x128xbf16>
    %cst_8 = arith.constant dense<0.000000e+00> : vector<2x128xf32>
    %13 = tpu.matmul %11, %12, %cst_8 {dimension_numbers = #tpu.dot_dimension_numbers<[1], [0], [0], [1], [0, 0, 1, 1], [], []>} : vector<2x128xbf16>, vector<128x128xbf16>, vector<2x128xf32> -> vector<2x128xf32>
    %c0_9 = arith.constant 0 : index
    %c0_10 = arith.constant 0 : index
    %14 = vector.load %arg5[%c0_9, %c0_10] : memref<1x128xf32, #tpu.memory_space<vmem>>, vector<1x128xf32>
    %15 = vector.broadcast %14 : vector<1x128xf32> to vector<2x128xf32>
    %16 = arith.addf %13, %15 : vector<2x128xf32>
    %17 = arith.negf %16 : vector<2x128xf32>
    %18 = math.exp %17 : vector<2x128xf32>
    %cst_11 = arith.constant 1.000000e+00 : f32
    %19 = vector.broadcast %cst_11 : f32 to vector<2x128xf32>
    %20 = arith.addf %19, %18 : vector<2x128xf32>
    %21 = arith.divf %19, %20 : vector<2x128xf32>
    %22 = arith.truncf %21 : vector<2x128xf32> to vector<2x128xbf16>
    %c0_12 = arith.constant 0 : index
    %c0_13 = arith.constant 0 : index
    %23 = vector.load %arg6[%c0_12, %c0_13] : memref<128x128xbf16, #tpu.memory_space<vmem>>, vector<128x128xbf16>
    %cst_14 = arith.constant dense<0.000000e+00> : vector<2x128xf32>
    %24 = tpu.matmul %22, %23, %cst_14 {dimension_numbers = #tpu.dot_dimension_numbers<[1], [0], [0], [1], [0, 0, 1, 1], [], []>} : vector<2x128xbf16>, vector<128x128xbf16>, vector<2x128xf32> -> vector<2x128xf32>
    %c0_15 = arith.constant 0 : index
    %c0_16 = arith.constant 0 : index
    %25 = vector.load %arg7[%c0_15, %c0_16] : memref<1x128xf32, #tpu.memory_space<vmem>>, vector<1x128xf32>
    %26 = vector.broadcast %25 : vector<1x128xf32> to vector<2x128xf32>
    %27 = arith.addf %24, %26 : vector<2x128xf32>
    %c0_17 = arith.constant 0 : index
    %c0_18 = arith.constant 0 : index
    %28 = vector.load %arg8[%c0_17, %c0_18] : memref<2x128xf32, #tpu.memory_space<vmem>>, vector<2x128xf32>
    tpu.vector_store %arg8[%c0_17, %c0_18], %27 {strides = array<i32>} : memref<2x128xf32, #tpu.memory_space<vmem>>, vector<2x128xf32>,
    return
  }
  func.func @transform_0(%arg0: i32) -> (i32, i32) {
    %c0_i32 = arith.constant 0 : i32
    %c0_i32_0 = arith.constant 0 : i32
    return %arg0, %c0_i32 : i32, i32
  }
  func.func @transform_1(%arg0: i32) -> (i32, i32) {
    %c0_i32 = arith.constant 0 : i32
    %c0_i32_0 = arith.constant 0 : i32
    %c0_i32_1 = arith.constant 0 : i32
    return %c0_i32, %c0_i32_0 : i32, i32
  }
  func.func @transform_2(%arg0: i32) -> (i32, i32) {
    %c0_i32 = arith.constant 0 : i32
    %c0_i32_0 = arith.constant 0 : i32
    %c0_i32_1 = arith.constant 0 : i32
    return %c0_i32, %c0_i32_0 : i32, i32
  }
  func.func @transform_3(%arg0: i32) -> (i32, i32) {
    %c0_i32 = arith.constant 0 : i32
    %c0_i32_0 = arith.constant 0 : i32
    %c0_i32_1 = arith.constant 0 : i32
    return %c0_i32, %c0_i32_0 : i32, i32
  }
  func.func @transform_4(%arg0: i32) -> (i32, i32) {
    %c0_i32 = arith.constant 0 : i32
    %c0_i32_0 = arith.constant 0 : i32
    %c0_i32_1 = arith.constant 0 : i32
    return %c0_i32, %c0_i32_0 : i32, i32
  }
  func.func @transform_5(%arg0: i32) -> (i32, i32) {
    %c0_i32 = arith.constant 0 : i32
    %c0_i32_0 = arith.constant 0 : i32
    %c0_i32_1 = arith.constant 0 : i32
    return %c0_i32, %c0_i32_0 : i32, i32
  }
  func.func @transform_6(%arg0: i32) -> (i32, i32) {
    %c0_i32 = arith.constant 0 : i32
    %c0_i32_0 = arith.constant 0 : i32
    %c0_i32_1 = arith.constant 0 : i32
    return %c0_i32, %c0_i32_0 : i32, i32
  }
  func.func @transform_7(%arg0: i32) -> (i32, i32) {
    %c0_i32 = arith.constant 0 : i32
    %c0_i32_0 = arith.constant 0 : i32
    return %arg0, %c0_i32 : i32, i32
  }
}

</mosaic_0001>

<llo_original>
// kernel: lenet_forward.3
$region0: #{lenet_forward.3}
  #allocation0 [shape = 'u32[]', space=smem, size = 0x4, offset = 0x4, fixed_abs, tag = 'smem constant byte address 0x4 - core index']
  #allocation1 [shape = 'u32[72,128]{1,0:T(1,128)}', space=vmem, size = 0x9000, scoped, tag = 'internal scratch']
  %s0 = inlined_call_operand.vmem [shape: bf16[392,32], index: 0, kind: input, shape index: {}]
  %s1 = inlined_call_operand.vmem [shape: bf16[392,32], index: 1, kind: input, shape index: {}]
  %s2 = inlined_call_operand.vmem [shape: bf16[392,32], index: 2, kind: input, shape index: {}]
  %s3 = inlined_call_operand.vmem [shape: bf16[392,32], index: 3, kind: input, shape index: {}]
  %s4 = inlined_call_operand.vmem [shape: bf16[32,6], index: 4, kind: input, shape index: {}]
  %s5 = inlined_call_operand.vmem [shape: f32[1,6], index: 5, kind: input, shape index: {}]
  %s6 = inlined_call_operand.vmem [shape: bf16[392,6], index: 6, kind: output, shape index: {}]
  %s7 = sld [smem:[#allocation0]]
  $region34: #{lenet_forward.3} parent=0
    _
  %s9 = ssub.s32 1, %s7
  %s10 = scalar_select 0, %s9, %s7
  // Predicated region
  $region2: #{lenet_forward.3} parent=0 // pred_check
    _
  $region3: #{lenet_forward.3} parent=0 // pred_check_branch
    %12 = sbr.rel (0) target = $region5
  $region4: #{lenet_forward.3} parent=0 // pred_region
    _
  $region5: #{lenet_forward.3} parent=0 // pred_fallthru
    _
  // Predicated region
  $region6: #{lenet_forward.3} parent=0 // pred_check
    _
  $region7: #{lenet_forward.3} parent=0 // pred_check_branch
    %14 = sbr.rel (0) target = $region9
  $region8: #{lenet_forward.3} parent=0 // pred_region
    _
  $region9: #{lenet_forward.3} parent=0 // pred_fallthru
    _
  // Predicated region
  $region10: #{lenet_forward.3} parent=0 // pred_check
    _
  $region11: #{lenet_forward.3} parent=0 // pred_check_branch
    %16 = sbr.rel (0) target = $region13
  $region12: #{lenet_forward.3} parent=0 // pred_region
    _
  $region13: #{lenet_forward.3} parent=0 // pred_fallthru
    _
  // Predicated region
  $region14: #{lenet_forward.3} parent=0 // pred_check
    _
  $region15: #{lenet_forward.3} parent=0 // pred_check_branch
    %18 = sbr.rel (0) target = $region17
  $region16: #{lenet_forward.3} parent=0 // pred_region
    _
  $region17: #{lenet_forward.3} parent=0 // pred_fallthru
    _
  // Predicated region
  $region18: #{lenet_forward.3} parent=0 // pred_check
    _
  $region19: #{lenet_forward.3} parent=0 // pred_check_branch
    %20 = sbr.rel (0) target = $region21
  $region20: #{lenet_forward.3} parent=0 // pred_region
    _
  $region21: #{lenet_forward.3} parent=0 // pred_fallthru
    _
  // Predicated region
  $region22: #{lenet_forward.3} parent=0 // pred_check
    _
  $region23: #{lenet_forward.3} parent=0 // pred_check_branch
    %22 = sbr.rel (0) target = $region25
  $region24: #{lenet_forward.3} parent=0 // pred_region
    _
  $region25: #{lenet_forward.3} parent=0 // pred_fallthru
    _
  %v24 = vld [vmem:[%s4] sm:$0xf]
  %v25 = vld [vmem:[%s4 + $0x4] sm:$0xf]
  %v26 = vld [vmem:[%s4 + $0x8] sm:$0xf]
  %v27 = vld [vmem:[%s4 + $0xc] sm:$0xf]
  %v28 = vld [vmem:[%s5] sm:$0x1]
  %v29 = vld [vmem:[%s0] sm:$0xf]
  %v30 = vld [vmem:[%s0 + $0x4] sm:$0xf]
  %v31 = vld [vmem:[%s0 + $0x8] sm:$0xf]
  %v32 = vld [vmem:[%s0 + $0xc] sm:$0xf]
  %v33 = vld [vmem:[%s0 + $0x10] sm:$0xf]
  %v34 = vld [vmem:[%s0 + $0x14] sm:$0xf]
  %v35 = vld [vmem:[%s0 + $0x18] sm:$0xf]
  %v36 = vld [vmem:[%s0 + $0x1c] sm:$0xf]
  %v37 = vld [vmem:[%s0 + $0x20] sm:$0xf]
  %v38 = vld [vmem:[%s0 + $0x24] sm:$0xf]
  %v39 = vld [vmem:[%s0 + $0x28] sm:$0xf]
  %v40 = vld [vmem:[%s0 + $0x2c] sm:$0xf]
  %v41 = vld [vmem:[%s0 + $0x30] sm:$0xf]
  %v42 = vld [vmem:[%s0 + $0x34] sm:$0xf]
  %v43 = vld [vmem:[%s0 + $0x38] sm:$0xf]
  %v44 = vld [vmem:[%s0 + $0x3c] sm:$0xf]
  %v45 = vld [vmem:[%s0 + $0x40] sm:$0xf]
  %v46 = vld [vmem:[%s0 + $0x44] sm:$0xf]
  %v47 = vld [vmem:[%s0 + $0x48] sm:$0xf]
  %v48 = vld [vmem:[%s0 + $0x4c] sm:$0xf]
  %v49 = vld [vmem:[%s0 + $0x50] sm:$0xf]
  %v50 = vld [vmem:[%s0 + $0x54] sm:$0xf]
  %v51 = vld [vmem:[%s0 + $0x58] sm:$0xf]
  %v52 = vld [vmem:[%s0 + $0x5c] sm:$0xf]
  %v53 = vld [vmem:[%s0 + $0x60] sm:$0xf]
  %v54 = vld [vmem:[%s0 + $0x64] sm:$0xf]
  %v55 = vld [vmem:[%s0 + $0x68] sm:$0xf]
  %v56 = vld [vmem:[%s0 + $0x6c] sm:$0xf]
  %v57 = vld [vmem:[%s0 + $0x70] sm:$0xf]
  %v58 = vld [vmem:[%s0 + $0x74] sm:$0xf]
  %v59 = vld [vmem:[%s0 + $0x78] sm:$0xf]
  %v60 = vld [vmem:[%s0 + $0x7c] sm:$0xf]
  %v61 = vld [vmem:[%s0 + $0x80] sm:$0xf]
  %v62 = vld [vmem:[%s0 + $0x84] sm:$0xf]
  %v63 = vld [vmem:[%s0 + $0x88] sm:$0xf]
  %v64 = vld [vmem:[%s0 + $0x8c] sm:$0xf]
  %v65 = vld [vmem:[%s0 + $0x90] sm:$0xf]
  %v66 = vld [vmem:[%s0 + $0x94] sm:$0xf]
  %v67 = vld [vmem:[%s0 + $0x98] sm:$0xf]
  %v68 = vld [vmem:[%s0 + $0x9c] sm:$0xf]
  %v69 = vld [vmem:[%s0 + $0xa0] sm:$0xf]
  %v70 = vld [vmem:[%s0 + $0xa4] sm:$0xf]
  %v71 = vld [vmem:[%s0 + $0xa8] sm:$0xf]
  %v72 = vld [vmem:[%s0 + $0xac] sm:$0xf]
  %v73 = vld [vmem:[%s0 + $0xb0] sm:$0xf]
  %v74 = vld [vmem:[%s0 + $0xb4] sm:$0xf]
  %v75 = vld [vmem:[%s0 + $0xb8] sm:$0xf]
  %v76 = vld [vmem:[%s0 + $0xbc] sm:$0xf]
  %v77 = vld [vmem:[%s0 + $0xc0] sm:$0xf]
  %v79 = vperm.slane %v28, 0
  %v130 = vunpack.c.l.b16 %v29
  %v131 = vunpack.c.l.b16 %v30
  %v132 = vunpack.c.l.b16 %v31
  %v133 = vunpack.c.l.b16 %v32
  %v134 = vunpack.c.l.b16 %v33
  %v135 = vunpack.c.l.b16 %v34
  %v136 = vunpack.c.l.b16 %v35
  %v137 = vunpack.c.l.b16 %v36
  %v138 = vunpack.c.l.b16 %v37
  %v139 = vunpack.c.l.b16 %v38
  %v140 = vunpack.c.l.b16 %v39
  %v141 = vunpack.c.l.b16 %v40
  %v142 = vunpack.c.l.b16 %v41
  %v143 = vunpack.c.l.b16 %v42
  %v144 = vunpack.c.l.b16 %v43
  %v145 = vunpack.c.l.b16 %v44
  %v146 = vunpack.c.l.b16 %v45
  %v147 = vunpack.c.l.b16 %v46
  %v148 = vunpack.c.l.b16 %v47
  %v149 = vunpack.c.l.b16 %v48
  %v150 = vunpack.c.l.b16 %v49
  %v151 = vunpack.c.l.b16 %v50
  %v152 = vunpack.c.l.b16 %v51
  %v153 = vunpack.c.l.b16 %v52
  %v154 = vunpack.c.l.b16 %v53
  %v155 = vunpack.c.l.b16 %v54
  %v156 = vunpack.c.l.b16 %v55
  %v157 = vunpack.c.l.b16 %v56
  %v158 = vunpack.c.l.b16 %v57
  %v159 = vunpack.c.l.b16 %v58
  %v160 = vunpack.c.l.b16 %v59
  %v161 = vunpack.c.l.b16 %v60
  %v162 = vunpack.c.l.b16 %v61
  %v163 = vunpack.c.l.b16 %v62
  %v164 = vunpack.c.l.b16 %v63
  %v165 = vunpack.c.l.b16 %v64
  %v166 = vunpack.c.l.b16 %v65
  %v167 = vunpack.c.l.b16 %v66
  %v168 = vunpack.c.l.b16 %v67
  %v169 = vunpack.c.l.b16 %v68
  %v170 = vunpack.c.l.b16 %v69
  %v171 = vunpack.c.l.b16 %v70
  %v172 = vunpack.c.l.b16 %v71
  %v173 = vunpack.c.l.b16 %v72
  %v174 = vunpack.c.l.b16 %v73
  %v175 = vunpack.c.l.b16 %v74
  %v176 = vunpack.c.l.b16 %v75
  %v177 = vunpack.c.l.b16 %v76
  %v178 = vunpack.c.l.b16 %v77
  %v179 = vpack.c.b16 %v131, %v130
  %v180 = vpack.c.b16 %v133, %v132
  %v181 = vpack.c.b16 %v135, %v134
  %v182 = vpack.c.b16 %v137, %v136
  %v183 = vpack.c.b16 %v139, %v138
  %v184 = vpack.c.b16 %v141, %v140
  %v185 = vpack.c.b16 %v143, %v142
  %v186 = vpack.c.b16 %v145, %v144
  %v187 = vpack.c.b16 %v147, %v146
  %v188 = vpack.c.b16 %v149, %v148
  %v189 = vpack.c.b16 %v151, %v150
  %v190 = vpack.c.b16 %v153, %v152
  %v191 = vpack.c.b16 %v155, %v154
  %v192 = vpack.c.b16 %v157, %v156
  %v193 = vpack.c.b16 %v159, %v158
  %v194 = vpack.c.b16 %v161, %v160
  %v195 = vpack.c.b16 %v163, %v162
  %v196 = vpack.c.b16 %v165, %v164
  %v197 = vpack.c.b16 %v167, %v166
  %v198 = vpack.c.b16 %v169, %v168
  %v199 = vpack.c.b16 %v171, %v170
  %v200 = vpack.c.b16 %v173, %v172
  %v201 = vpack.c.b16 %v175, %v174
  %v202 = vpack.c.b16 %v177, %v176
  %v203 = vpack.c.b16 %v178, %v178
  %v208 = vunpack.c.l.b16 %v24
  %v209 = vunpack.c.l.b16 %v25
  %v210 = vunpack.c.l.b16 %v26
  %v211 = vunpack.c.l.b16 %v27
  %v212 = vpack.c.b16 %v209, %v208
  %v213 = vpack.c.b16 %v211, %v210
  %vm216 = vcmask 261120
  %v218 = vsel %vm216, %v179, 0
  %v221 = vsel %vm216, %v180, 0
  %v224 = vsel %vm216, %v181, 0
  %v227 = vsel %vm216, %v182, 0
  %v230 = vsel %vm216, %v183, 0
  %v233 = vsel %vm216, %v184, 0
  %v236 = vsel %vm216, %v185, 0
  %v239 = vsel %vm216, %v186, 0
  %v242 = vsel %vm216, %v187, 0
  %v245 = vsel %vm216, %v188, 0
  %v248 = vsel %vm216, %v189, 0
  %v251 = vsel %vm216, %v190, 0
  %v254 = vsel %vm216, %v191, 0
  %v257 = vsel %vm216, %v192, 0
  %v260 = vsel %vm216, %v193, 0
  %v263 = vsel %vm216, %v194, 0
  %v266 = vsel %vm216, %v195, 0
  %v269 = vsel %vm216, %v196, 0
  %v272 = vsel %vm216, %v197, 0
  %v275 = vsel %vm216, %v198, 0
  %v278 = vsel %vm216, %v199, 0
  %v281 = vsel %vm216, %v200, 0
  %v284 = vsel %vm216, %v201, 0
  %v287 = vsel %vm216, %v202, 0
  %v290 = vsel %vm216, %v203, 0
  %292 = vmatpush.bf16.msra.mxu0 0
  %293 = vmatpush.bf16.msra.mxu0 0
  %294 = vmatpush.bf16.msra.mxu0 0
  %295 = vmatpush.bf16.msra.mxu0 0
  %296 = vmatpush.bf16.msra.mxu0 0
  %297 = vmatpush.bf16.msra.mxu0 0
  %298 = vmatpush.bf16.msra.mxu0 %v213
  %299 = vmatpush.bf16.msra.mxu0 %v212
  %300 = vmatmul.bf16.gmra.mxu0 %v218
  %v301 = vpop.f32.mrf.mxu0
  %v302 = vadd.f32 %v79, %v301
  %v303 = vpop.f32.mrf.mxu0
  %v304 = vadd.f32 %v79, %v303
  %305 = vmatmul.bf16.gmra.mxu0 %v221
  %v306 = vpop.f32.mrf.mxu0
  %v307 = vadd.f32 %v79, %v306
  %v308 = vpop.f32.mrf.mxu0
  %v309 = vadd.f32 %v79, %v308
  %310 = vmatmul.bf16.gmra.mxu0 %v224
  %v311 = vpop.f32.mrf.mxu0
  %v312 = vadd.f32 %v79, %v311
  %v313 = vpop.f32.mrf.mxu0
  %v314 = vadd.f32 %v79, %v313
  %315 = vmatmul.bf16.gmra.mxu0 %v227
  %v316 = vpop.f32.mrf.mxu0
  %v317 = vadd.f32 %v79, %v316
  %v318 = vpop.f32.mrf.mxu0
  %v319 = vadd.f32 %v79, %v318
  %320 = vmatmul.bf16.gmra.mxu0 %v230
  %v321 = vpop.f32.mrf.mxu0
  %v322 = vadd.f32 %v79, %v321
  %v323 = vpop.f32.mrf.mxu0
  %v324 = vadd.f32 %v79, %v323
  %325 = vmatmul.bf16.gmra.mxu0 %v233
  %v326 = vpop.f32.mrf.mxu0
  %v327 = vadd.f32 %v79, %v326
  %v328 = vpop.f32.mrf.mxu0
  %v329 = vadd.f32 %v79, %v328
  %330 = vmatmul.bf16.gmra.mxu0 %v236
  %v331 = vpop.f32.mrf.mxu0
  %v332 = vadd.f32 %v79, %v331
  %v333 = vpop.f32.mrf.mxu0
  %v334 = vadd.f32 %v79, %v333
  %335 = vmatmul.bf16.gmra.mxu0 %v239
  %v336 = vpop.f32.mrf.mxu0
  %v337 = vadd.f32 %v79, %v336
  %v338 = vpop.f32.mrf.mxu0
  %v339 = vadd.f32 %v79, %v338
  %340 = vmatmul.bf16.gmra.mxu0 %v242
  %v341 = vpop.f32.mrf.mxu0
  %v342 = vadd.f32 %v79, %v341
  %v343 = vpop.f32.mrf.mxu0
  %v344 = vadd.f32 %v79, %v343
  %345 = vmatmul.bf16.gmra.mxu0 %v245
  %v346 = vpop.f32.mrf.mxu0
  %v347 = vadd.f32 %v79, %v346
  %v348 = vpop.f32.mrf.mxu0
  %v349 = vadd.f32 %v79, %v348
  %350 = vmatmul.bf16.gmra.mxu0 %v248
  %v351 = vpop.f32.mrf.mxu0
  %v352 = vadd.f32 %v79, %v351
  %v353 = vpop.f32.mrf.mxu0
  %v354 = vadd.f32 %v79, %v353
  %355 = vmatmul.bf16.gmra.mxu0 %v251
  %v356 = vpop.f32.mrf.mxu0
  %v357 = vadd.f32 %v79, %v356
  %v358 = vpop.f32.mrf.mxu0
  %v359 = vadd.f32 %v79, %v358
  %360 = vmatmul.bf16.gmra.mxu0 %v254
  %v361 = vpop.f32.mrf.mxu0
  %v362 = vadd.f32 %v79, %v361
  %v363 = vpop.f32.mrf.mxu0
  %v364 = vadd.f32 %v79, %v363
  %365 = vmatmul.bf16.gmra.mxu0 %v257
  %v366 = vpop.f32.mrf.mxu0
  %v367 = vadd.f32 %v79, %v366
  %v368 = vpop.f32.mrf.mxu0
  %v369 = vadd.f32 %v79, %v368
  %370 = vmatmul.bf16.gmra.mxu0 %v260
  %v371 = vpop.f32.mrf.mxu0
  %v372 = vadd.f32 %v79, %v371
  %v373 = vpop.f32.mrf.mxu0
  %v374 = vadd.f32 %v79, %v373
  %375 = vmatmul.bf16.gmra.mxu0 %v263
  %v376 = vpop.f32.mrf.mxu0
  %v377 = vadd.f32 %v79, %v376
  %v378 = vpop.f32.mrf.mxu0
  %v379 = vadd.f32 %v79, %v378
  %380 = vmatmul.bf16.gmra.mxu0 %v266
  %v381 = vpop.f32.mrf.mxu0
  %v382 = vadd.f32 %v79, %v381
  %v383 = vpop.f32.mrf.mxu0
  %v384 = vadd.f32 %v79, %v383
  %385 = vmatmul.bf16.gmra.mxu0 %v269
  %v386 = vpop.f32.mrf.mxu0
  %v387 = vadd.f32 %v79, %v386
  %v388 = vpop.f32.mrf.mxu0
  %v389 = vadd.f32 %v79, %v388
  %390 = vmatmul.bf16.gmra.mxu0 %v272
  %v391 = vpop.f32.mrf.mxu0
  %v392 = vadd.f32 %v79, %v391
  %v393 = vpop.f32.mrf.mxu0
  %v394 = vadd.f32 %v79, %v393
  %395 = vmatmul.bf16.gmra.mxu0 %v275
  %v396 = vpop.f32.mrf.mxu0
  %v397 = vadd.f32 %v79, %v396
  %v398 = vpop.f32.mrf.mxu0
  %v399 = vadd.f32 %v79, %v398
  %400 = vmatmul.bf16.gmra.mxu0 %v278
  %v401 = vpop.f32.mrf.mxu0
  %v402 = vadd.f32 %v79, %v401
  %v403 = vpop.f32.mrf.mxu0
  %v404 = vadd.f32 %v79, %v403
  %405 = vmatmul.bf16.gmra.mxu0 %v281
  %v406 = vpop.f32.mrf.mxu0
  %v407 = vadd.f32 %v79, %v406
  %v408 = vpop.f32.mrf.mxu0
  %v409 = vadd.f32 %v79, %v408
  %410 = vmatmul.bf16.gmra.mxu0 %v284
  %v411 = vpop.f32.mrf.mxu0
  %v412 = vadd.f32 %v79, %v411
  %v413 = vpop.f32.mrf.mxu0
  %v414 = vadd.f32 %v79, %v413
  %415 = vmatmul.bf16.gmra.mxu0 %v287
  %v416 = vpop.f32.mrf.mxu0
  %v417 = vadd.f32 %v79, %v416
  %v418 = vpop.f32.mrf.mxu0
  %v419 = vadd.f32 %v79, %v418
  %420 = vmatmul.bf16.gmra.mxu0 %v290
  %v421 = vpop.f32.mrf.mxu0
  %v422 = vadd.f32 %v79, %v421
  %v423 = vpop.f32.mrf.mxu0
  %424 = vdwg.mxu0
  %v425 = vtanh.pop %v302
  %v426 = vtanh.pop %v304
  %v427 = vtanh.pop %v307
  %v428 = vtanh.pop %v309
  %v429 = vtanh.pop %v312
  %v430 = vtanh.pop %v314
  %v431 = vtanh.pop %v317
  %v432 = vtanh.pop %v319
  %v433 = vtanh.pop %v322
  %v434 = vtanh.pop %v324
  %v435 = vtanh.pop %v327
  %v436 = vtanh.pop %v329
  %v437 = vtanh.pop %v332
  %v438 = vtanh.pop %v334
  %v439 = vtanh.pop %v337
  %v440 = vtanh.pop %v339
  %v441 = vtanh.pop %v342
  %v442 = vtanh.pop %v344
  %v443 = vtanh.pop %v347
  %v444 = vtanh.pop %v349
  %v445 = vtanh.pop %v352
  %v446 = vtanh.pop %v354
  %v447 = vtanh.pop %v357
  %v448 = vtanh.pop %v359
  %v449 = vtanh.pop %v362
  %v450 = vtanh.pop %v364
  %v451 = vtanh.pop %v367
  %v452 = vtanh.pop %v369
  %v453 = vtanh.pop %v372
  %v454 = vtanh.pop %v374
  %v455 = vtanh.pop %v377
  %v456 = vtanh.pop %v379
  %v457 = vtanh.pop %v382
  %v458 = vtanh.pop %v384
  %v459 = vtanh.pop %v387
  %v460 = vtanh.pop %v389
  %v461 = vtanh.pop %v392
  %v462 = vtanh.pop %v394
  %v463 = vtanh.pop %v397
  %v464 = vtanh.pop %v399
  %v465 = vtanh.pop %v402
  %v466 = vtanh.pop %v404
  %v467 = vtanh.pop %v407
  %v468 = vtanh.pop %v409
  %v469 = vtanh.pop %v412
  %v470 = vtanh.pop %v414
  %v471 = vtanh.pop %v417
  %v472 = vtanh.pop %v419
  %v473 = vtanh.pop %v422
  %v474 = vld [vmem:[%s1] sm:$0xf]
  %v475 = vld [vmem:[%s1 + $0x4] sm:$0xf]
  %v476 = vld [vmem:[%s1 + $0x8] sm:$0xf]
  %v477 = vld [vmem:[%s1 + $0xc] sm:$0xf]
  %v478 = vld [vmem:[%s1 + $0x10] sm:$0xf]
  %v479 = vld [vmem:[%s1 + $0x14] sm:$0xf]
  %v480 = vld [vmem:[%s1 + $0x18] sm:$0xf]
  %v481 = vld [vmem:[%s1 + $0x1c] sm:$0xf]
  %v482 = vld [vmem:[%s1 + $0x20] sm:$0xf]
  %v483 = vld [vmem:[%s1 + $0x24] sm:$0xf]
  %v484 = vld [vmem:[%s1 + $0x28] sm:$0xf]
  %v485 = vld [vmem:[%s1 + $0x2c] sm:$0xf]
  %v486 = vld [vmem:[%s1 + $0x30] sm:$0xf]
  %v487 = vld [vmem:[%s1 + $0x34] sm:$0xf]
  %v488 = vld [vmem:[%s1 + $0x38] sm:$0xf]
  %v489 = vld [vmem:[%s1 + $0x3c] sm:$0xf]
  %v490 = vld [vmem:[%s1 + $0x40] sm:$0xf]
  %v491 = vld [vmem:[%s1 + $0x44] sm:$0xf]
  %v492 = vld [vmem:[%s1 + $0x48] sm:$0xf]
  %v493 = vld [vmem:[%s1 + $0x4c] sm:$0xf]
  %v494 = vld [vmem:[%s1 + $0x50] sm:$0xf]
  %v495 = vld [vmem:[%s1 + $0x54] sm:$0xf]
  %v496 = vld [vmem:[%s1 + $0x58] sm:$0xf]
  %v497 = vld [vmem:[%s1 + $0x5c] sm:$0xf]
  %v498 = vld [vmem:[%s1 + $0x60] sm:$0xf]
  %v499 = vld [vmem:[%s1 + $0x64] sm:$0xf]
  %v500 = vld [vmem:[%s1 + $0x68] sm:$0xf]
  %v501 = vld [vmem:[%s1 + $0x6c] sm:$0xf]
  %v502 = vld [vmem:[%s1 + $0x70] sm:$0xf]
  %v503 = vld [vmem:[%s1 + $0x74] sm:$0xf]
  %v504 = vld [vmem:[%s1 + $0x78] sm:$0xf]
  %v505 = vld [vmem:[%s1 + $0x7c] sm:$0xf]
  %v506 = vld [vmem:[%s1 + $0x80] sm:$0xf]
  %v507 = vld [vmem:[%s1 + $0x84] sm:$0xf]
  %v508 = vld [vmem:[%s1 + $0x88] sm:$0xf]
  %v509 = vld [vmem:[%s1 + $0x8c] sm:$0xf]
  %v510 = vld [vmem:[%s1 + $0x90] sm:$0xf]
  %v511 = vld [vmem:[%s1 + $0x94] sm:$0xf]
  %v512 = vld [vmem:[%s1 + $0x98] sm:$0xf]
  %v513 = vld [vmem:[%s1 + $0x9c] sm:$0xf]
  %v514 = vld [vmem:[%s1 + $0xa0] sm:$0xf]
  %v515 = vld [vmem:[%s1 + $0xa4] sm:$0xf]
  %v516 = vld [vmem:[%s1 + $0xa8] sm:$0xf]
  %v517 = vld [vmem:[%s1 + $0xac] sm:$0xf]
  %v518 = vld [vmem:[%s1 + $0xb0] sm:$0xf]
  %v519 = vld [vmem:[%s1 + $0xb4] sm:$0xf]
  %v520 = vld [vmem:[%s1 + $0xb8] sm:$0xf]
  %v521 = vld [vmem:[%s1 + $0xbc] sm:$0xf]
  %v522 = vld [vmem:[%s1 + $0xc0] sm:$0xf]
  %v572 = vunpack.c.l.b16 %v474
  %v573 = vunpack.c.l.b16 %v475
  %v574 = vunpack.c.l.b16 %v476
  %v575 = vunpack.c.l.b16 %v477
  %v576 = vunpack.c.l.b16 %v478
  %v577 = vunpack.c.l.b16 %v479
  %v578 = vunpack.c.l.b16 %v480
  %v579 = vunpack.c.l.b16 %v481
  %v580 = vunpack.c.l.b16 %v482
  %v581 = vunpack.c.l.b16 %v483
  %v582 = vunpack.c.l.b16 %v484
  %v583 = vunpack.c.l.b16 %v485
  %v584 = vunpack.c.l.b16 %v486
  %v585 = vunpack.c.l.b16 %v487
  %v586 = vunpack.c.l.b16 %v488
  %v587 = vunpack.c.l.b16 %v489
  %v588 = vunpack.c.l.b16 %v490
  %v589 = vunpack.c.l.b16 %v491
  %v590 = vunpack.c.l.b16 %v492
  %v591 = vunpack.c.l.b16 %v493
  %v592 = vunpack.c.l.b16 %v494
  %v593 = vunpack.c.l.b16 %v495
  %v594 = vunpack.c.l.b16 %v496
  %v595 = vunpack.c.l.b16 %v497
  %v596 = vunpack.c.l.b16 %v498
  %v597 = vunpack.c.l.b16 %v499
  %v598 = vunpack.c.l.b16 %v500
  %v599 = vunpack.c.l.b16 %v501
  %v600 = vunpack.c.l.b16 %v502
  %v601 = vunpack.c.l.b16 %v503
  %v602 = vunpack.c.l.b16 %v504
  %v603 = vunpack.c.l.b16 %v505
  %v604 = vunpack.c.l.b16 %v506
  %v605 = vunpack.c.l.b16 %v507
  %v606 = vunpack.c.l.b16 %v508
  %v607 = vunpack.c.l.b16 %v509
  %v608 = vunpack.c.l.b16 %v510
  %v609 = vunpack.c.l.b16 %v511
  %v610 = vunpack.c.l.b16 %v512
  %v611 = vunpack.c.l.b16 %v513
  %v612 = vunpack.c.l.b16 %v514
  %v613 = vunpack.c.l.b16 %v515
  %v614 = vunpack.c.l.b16 %v516
  %v615 = vunpack.c.l.b16 %v517
  %v616 = vunpack.c.l.b16 %v518
  %v617 = vunpack.c.l.b16 %v519
  %v618 = vunpack.c.l.b16 %v520
  %v619 = vunpack.c.l.b16 %v521
  %v620 = vunpack.c.l.b16 %v522
  %v621 = vpack.c.b16 %v573, %v572
  %v622 = vpack.c.b16 %v575, %v574
  %v623 = vpack.c.b16 %v577, %v576
  %v624 = vpack.c.b16 %v579, %v578
  %v625 = vpack.c.b16 %v581, %v580
  %v626 = vpack.c.b16 %v583, %v582
  %v627 = vpack.c.b16 %v585, %v584
  %v628 = vpack.c.b16 %v587, %v586
  %v629 = vpack.c.b16 %v589, %v588
  %v630 = vpack.c.b16 %v591, %v590
  %v631 = vpack.c.b16 %v593, %v592
  %v632 = vpack.c.b16 %v595, %v594
  %v633 = vpack.c.b16 %v597, %v596
  %v634 = vpack.c.b16 %v599, %v598
  %v635 = vpack.c.b16 %v601, %v600
  %v636 = vpack.c.b16 %v603, %v602
  %v637 = vpack.c.b16 %v605, %v604
  %v638 = vpack.c.b16 %v607, %v606
  %v639 = vpack.c.b16 %v609, %v608
  %v640 = vpack.c.b16 %v611, %v610
  %v641 = vpack.c.b16 %v613, %v612
  %v642 = vpack.c.b16 %v615, %v614
  %v643 = vpack.c.b16 %v617, %v616
  %v644 = vpack.c.b16 %v619, %v618
  %v645 = vpack.c.b16 %v620, %v620
  %v647 = vsel %vm216, %v621, 0
  %v650 = vsel %vm216, %v622, 0
  %v653 = vsel %vm216, %v623, 0
  %v656 = vsel %vm216, %v624, 0
  %v659 = vsel %vm216, %v625, 0
  %v662 = vsel %vm216, %v626, 0
  %v665 = vsel %vm216, %v627, 0
  %v668 = vsel %vm216, %v628, 0
  %v671 = vsel %vm216, %v629, 0
  %v674 = vsel %vm216, %v630, 0
  %v677 = vsel %vm216, %v631, 0
  %v680 = vsel %vm216, %v632, 0
  %v683 = vsel %vm216, %v633, 0
  %v686 = vsel %vm216, %v634, 0
  %v689 = vsel %vm216, %v635, 0
  %v692 = vsel %vm216, %v636, 0
  %v695 = vsel %vm216, %v637, 0
  %v698 = vsel %vm216, %v638, 0
  %v701 = vsel %vm216, %v639, 0
  %v704 = vsel %vm216, %v640, 0
  %v707 = vsel %vm216, %v641, 0
  %v710 = vsel %vm216, %v642, 0
  %v713 = vsel %vm216, %v643, 0
  %v716 = vsel %vm216, %v644, 0
  %v719 = vsel %vm216, %v645, 0
  %721 = vmatpush.bf16.msra.mxu0 0
  %722 = vmatpush.bf16.msra.mxu0 0
  %723 = vmatpush.bf16.msra.mxu0 0
  %724 = vmatpush.bf16.msra.mxu0 0
  %725 = vmatpush.bf16.msra.mxu0 0
  %726 = vmatpush.bf16.msra.mxu0 0
  %727 = vmatpush.bf16.msra.mxu0 %v213
  %728 = vmatpush.bf16.msra.mxu0 %v212
  %729 = vmatmul.bf16.gmra.mxu0 %v647
  %v730 = vpop.f32.mrf.mxu0
  %v731 = vadd.f32 %v79, %v730
  %v732 = vpop.f32.mrf.mxu0
  %v733 = vadd.f32 %v79, %v732
  %734 = vmatmul.bf16.gmra.mxu0 %v650
  %v735 = vpop.f32.mrf.mxu0
  %v736 = vadd.f32 %v79, %v735
  %v737 = vpop.f32.mrf.mxu0
  %v738 = vadd.f32 %v79, %v737
  %739 = vmatmul.bf16.gmra.mxu0 %v653
  %v740 = vpop.f32.mrf.mxu0
  %v741 = vadd.f32 %v79, %v740
  %v742 = vpop.f32.mrf.mxu0
  %v743 = vadd.f32 %v79, %v742
  %744 = vmatmul.bf16.gmra.mxu0 %v656
  %v745 = vpop.f32.mrf.mxu0
  %v746 = vadd.f32 %v79, %v745
  %v747 = vpop.f32.mrf.mxu0
  %v748 = vadd.f32 %v79, %v747
  %749 = vmatmul.bf16.gmra.mxu0 %v659
  %v750 = vpop.f32.mrf.mxu0
  %v751 = vadd.f32 %v79, %v750
  %v752 = vpop.f32.mrf.mxu0
  %v753 = vadd.f32 %v79, %v752
  %754 = vmatmul.bf16.gmra.mxu0 %v662
  %v755 = vpop.f32.mrf.mxu0
  %v756 = vadd.f32 %v79, %v755
  %v757 = vpop.f32.mrf.mxu0
  %v758 = vadd.f32 %v79, %v757
  %759 = vmatmul.bf16.gmra.mxu0 %v665
  %v760 = vpop.f32.mrf.mxu0
  %v761 = vadd.f32 %v79, %v760
  %v762 = vpop.f32.mrf.mxu0
  %v763 = vadd.f32 %v79, %v762
  %764 = vmatmul.bf16.gmra.mxu0 %v668
  %v765 = vpop.f32.mrf.mxu0
  %v766 = vadd.f32 %v79, %v765
  %v767 = vpop.f32.mrf.mxu0
  %v768 = vadd.f32 %v79, %v767
  %769 = vmatmul.bf16.gmra.mxu0 %v671
  %v770 = vpop.f32.mrf.mxu0
  %v771 = vadd.f32 %v79, %v770
  %v772 = vpop.f32.mrf.mxu0
  %v773 = vadd.f32 %v79, %v772
  %774 = vmatmul.bf16.gmra.mxu0 %v674
  %v775 = vpop.f32.mrf.mxu0
  %v776 = vadd.f32 %v79, %v775
  %v777 = vpop.f32.mrf.mxu0
  %v778 = vadd.f32 %v79, %v777
  %779 = vmatmul.bf16.gmra.mxu0 %v677
  %v780 = vpop.f32.mrf.mxu0
  %v781 = vadd.f32 %v79, %v780
  %v782 = vpop.f32.mrf.mxu0
  %v783 = vadd.f32 %v79, %v782
  %784 = vmatmul.bf16.gmra.mxu0 %v680
  %v785 = vpop.f32.mrf.mxu0
  %v786 = vadd.f32 %v79, %v785
  %v787 = vpop.f32.mrf.mxu0
  %v788 = vadd.f32 %v79, %v787
  %789 = vmatmul.bf16.gmra.mxu0 %v683
  %v790 = vpop.f32.mrf.mxu0
  %v791 = vadd.f32 %v79, %v790
  %v792 = vpop.f32.mrf.mxu0
  %v793 = vadd.f32 %v79, %v792
  %794 = vmatmul.bf16.gmra.mxu0 %v686
  %v795 = vpop.f32.mrf.mxu0
  %v796 = vadd.f32 %v79, %v795
  %v797 = vpop.f32.mrf.mxu0
  %v798 = vadd.f32 %v79, %v797
  %799 = vmatmul.bf16.gmra.mxu0 %v689
  %v800 = vpop.f32.mrf.mxu0
  %v801 = vadd.f32 %v79, %v800
  %v802 = vpop.f32.mrf.mxu0
  %v803 = vadd.f32 %v79, %v802
  %804 = vmatmul.bf16.gmra.mxu0 %v692
  %v805 = vpop.f32.mrf.mxu0
  %v806 = vadd.f32 %v79, %v805
  %v807 = vpop.f32.mrf.mxu0
  %v808 = vadd.f32 %v79, %v807
  %809 = vmatmul.bf16.gmra.mxu0 %v695
  %v810 = vpop.f32.mrf.mxu0
  %v811 = vadd.f32 %v79, %v810
  %v812 = vpop.f32.mrf.mxu0
  %v813 = vadd.f32 %v79, %v812
  %814 = vmatmul.bf16.gmra.mxu0 %v698
  %v815 = vpop.f32.mrf.mxu0
  %v816 = vadd.f32 %v79, %v815
  %v817 = vpop.f32.mrf.mxu0
  %v818 = vadd.f32 %v79, %v817
  %819 = vmatmul.bf16.gmra.mxu0 %v701
  %v820 = vpop.f32.mrf.mxu0
  %v821 = vadd.f32 %v79, %v820
  %v822 = vpop.f32.mrf.mxu0
  %v823 = vadd.f32 %v79, %v822
  %824 = vmatmul.bf16.gmra.mxu0 %v704
  %v825 = vpop.f32.mrf.mxu0
  %v826 = vadd.f32 %v79, %v825
  %v827 = vpop.f32.mrf.mxu0
  %v828 = vadd.f32 %v79, %v827
  %829 = vmatmul.bf16.gmra.mxu0 %v707
  %v830 = vpop.f32.mrf.mxu0
  %v831 = vadd.f32 %v79, %v830
  %v832 = vpop.f32.mrf.mxu0
  %v833 = vadd.f32 %v79, %v832
  %834 = vmatmul.bf16.gmra.mxu0 %v710
  %v835 = vpop.f32.mrf.mxu0
  %v836 = vadd.f32 %v79, %v835
  %v837 = vpop.f32.mrf.mxu0
  %v838 = vadd.f32 %v79, %v837
  %839 = vmatmul.bf16.gmra.mxu0 %v713
  %v840 = vpop.f32.mrf.mxu0
  %v841 = vadd.f32 %v79, %v840
  %v842 = vpop.f32.mrf.mxu0
  %v843 = vadd.f32 %v79, %v842
  %844 = vmatmul.bf16.gmra.mxu0 %v716
  %v845 = vpop.f32.mrf.mxu0
  %v846 = vadd.f32 %v79, %v845
  %v847 = vpop.f32.mrf.mxu0
  %v848 = vadd.f32 %v79, %v847
  %849 = vmatmul.bf16.gmra.mxu0 %v719
  %v850 = vpop.f32.mrf.mxu0
  %v851 = vadd.f32 %v79, %v850
  %v852 = vpop.f32.mrf.mxu0
  %853 = vdwg.mxu0
  %v854 = vtanh.pop %v731
  %v855 = vtanh.pop %v733
  %v856 = vtanh.pop %v736
  %v857 = vtanh.pop %v738
  %v858 = vtanh.pop %v741
  %v859 = vtanh.pop %v743
  %v860 = vtanh.pop %v746
  %v861 = vtanh.pop %v748
  %v862 = vtanh.pop %v751
  %v863 = vtanh.pop %v753
  %v864 = vtanh.pop %v756
  %v865 = vtanh.pop %v758
  %v866 = vtanh.pop %v761
  %v867 = vtanh.pop %v763
  %v868 = vtanh.pop %v766
  %v869 = vtanh.pop %v768
  %v870 = vtanh.pop %v771
  %v871 = vtanh.pop %v773
  %v872 = vtanh.pop %v776
  %v873 = vtanh.pop %v778
  %v874 = vtanh.pop %v781
  %v875 = vtanh.pop %v783
  %v876 = vtanh.pop %v786
  %v877 = vtanh.pop %v788
  %v878 = vtanh.pop %v791
  %v879 = vtanh.pop %v793
  %v880 = vtanh.pop %v796
  %v881 = vtanh.pop %v798
  %v882 = vtanh.pop %v801
  %v883 = vtanh.pop %v803
  %v884 = vtanh.pop %v806
  %v885 = vtanh.pop %v808
  %v886 = vtanh.pop %v811
  %v887 = vtanh.pop %v813
  %v888 = vtanh.pop %v816
  %v889 = vtanh.pop %v818
  %v890 = vtanh.pop %v821
  %v891 = vtanh.pop %v823
  %v892 = vtanh.pop %v826
  %v893 = vtanh.pop %v828
  %v894 = vtanh.pop %v831
  %v895 = vtanh.pop %v833
  %v896 = vtanh.pop %v836
  %v897 = vtanh.pop %v838
  %v898 = vtanh.pop %v841
  %v899 = vtanh.pop %v843
  %v900 = vtanh.pop %v846
  %v901 = vtanh.pop %v848
  %v902 = vtanh.pop %v851
  %v903 = vmax.f32 %v425, %v854
  %v904 = vmax.f32 %v426, %v855
  %v905 = vmax.f32 %v427, %v856
  %v906 = vmax.f32 %v428, %v857
  %v907 = vmax.f32 %v429, %v858
  %v908 = vmax.f32 %v430, %v859
  %v909 = vmax.f32 %v431, %v860
  %v910 = vmax.f32 %v432, %v861
  %v911 = vmax.f32 %v433, %v862
  %v912 = vmax.f32 %v434, %v863
  %v913 = vmax.f32 %v435, %v864
  %v914 = vmax.f32 %v436, %v865
  %v915 = vmax.f32 %v437, %v866
  %v916 = vmax.f32 %v438, %v867
  %v917 = vmax.f32 %v439, %v868
  %v918 = vmax.f32 %v440, %v869
  %v919 = vmax.f32 %v441, %v870
  %v920 = vmax.f32 %v442, %v871
  %v921 = vmax.f32 %v443, %v872
  %v922 = vmax.f32 %v444, %v873
  %v923 = vmax.f32 %v445, %v874
  %v924 = vmax.f32 %v446, %v875
  %v925 = vmax.f32 %v447, %v876
  %v926 = vmax.f32 %v448, %v877
  %v927 = vmax.f32 %v449, %v878
  %v928 = vmax.f32 %v450, %v879
  %v929 = vmax.f32 %v451, %v880
  %v930 = vmax.f32 %v452, %v881
  %v931 = vmax.f32 %v453, %v882
  %v932 = vmax.f32 %v454, %v883
  %v933 = vmax.f32 %v455, %v884
  %v934 = vmax.f32 %v456, %v885
  %v935 = vmax.f32 %v457, %v886
  %v936 = vmax.f32 %v458, %v887
  %v937 = vmax.f32 %v459, %v888
  %v938 = vmax.f32 %v460, %v889
  %v939 = vmax.f32 %v461, %v890
  %v940 = vmax.f32 %v462, %v891
  %v941 = vmax.f32 %v463, %v892
  %v942 = vmax.f32 %v464, %v893
  %v943 = vmax.f32 %v465, %v894
  %v944 = vmax.f32 %v466, %v895
  %v945 = vmax.f32 %v467, %v896
  %v946 = vmax.f32 %v468, %v897
  %v947 = vmax.f32 %v469, %v898
  %v948 = vmax.f32 %v470, %v899
  %v949 = vmax.f32 %v471, %v900
  %v950 = vmax.f32 %v472, %v901
  %v951 = vmax.f32 %v473, %v902
  %v952 = vld [vmem:[%s2] sm:$0xf]
  %v953 = vld [vmem:[%s2 + $0x4] sm:$0xf]
  %v954 = vld [vmem:[%s2 + $0x8] sm:$0xf]
  %v955 = vld [vmem:[%s2 + $0xc] sm:$0xf]
  %v956 = vld [vmem:[%s2 + $0x10] sm:$0xf]
  %v957 = vld [vmem:[%s2 + $0x14] sm:$0xf]
  %v958 = vld [vmem:[%s2 + $0x18] sm:$0xf]
  %v959 = vld [vmem:[%s2 + $0x1c] sm:$0xf]
  %v960 = vld [vmem:[%s2 + $0x20] sm:$0xf]
  %v961 = vld [vmem:[%s2 + $0x24] sm:$0xf]
  %v962 = vld [vmem:[%s2 + $0x28] sm:$0xf]
  %v963 = vld [vmem:[%s2 + $0x2c] sm:$0xf]
  %v964 = vld [vmem:[%s2 + $0x30] sm:$0xf]
  %v965 = vld [vmem:[%s2 + $0x34] sm:$0xf]
  %v966 = vld [vmem:[%s2 + $0x38] sm:$0xf]
  %v967 = vld [vmem:[%s2 + $0x3c] sm:$0xf]
  %v968 = vld [vmem:[%s2 + $0x40] sm:$0xf]
  %v969 = vld [vmem:[%s2 + $0x44] sm:$0xf]
  %v970 = vld [vmem:[%s2 + $0x48] sm:$0xf]
  %v971 = vld [vmem:[%s2 + $0x4c] sm:$0xf]
  %v972 = vld [vmem:[%s2 + $0x50] sm:$0xf]
  %v973 = vld [vmem:[%s2 + $0x54] sm:$0xf]
  %v974 = vld [vmem:[%s2 + $0x58] sm:$0xf]
  %v975 = vld [vmem:[%s2 + $0x5c] sm:$0xf]
  %v976 = vld [vmem:[%s2 + $0x60] sm:$0xf]
  %v977 = vld [vmem:[%s2 + $0x64] sm:$0xf]
  %v978 = vld [vmem:[%s2 + $0x68] sm:$0xf]
  %v979 = vld [vmem:[%s2 + $0x6c] sm:$0xf]
  %v980 = vld [vmem:[%s2 + $0x70] sm:$0xf]
  %v981 = vld [vmem:[%s2 + $0x74] sm:$0xf]
  %v982 = vld [vmem:[%s2 + $0x78] sm:$0xf]
  %v983 = vld [vmem:[%s2 + $0x7c] sm:$0xf]
  %v984 = vld [vmem:[%s2 + $0x80] sm:$0xf]
  %v985 = vld [vmem:[%s2 + $0x84] sm:$0xf]
  %v986 = vld [vmem:[%s2 + $0x88] sm:$0xf]
  %v987 = vld [vmem:[%s2 + $0x8c] sm:$0xf]
  %v988 = vld [vmem:[%s2 + $0x90] sm:$0xf]
  %v989 = vld [vmem:[%s2 + $0x94] sm:$0xf]
  %v990 = vld [vmem:[%s2 + $0x98] sm:$0xf]
  %v991 = vld [vmem:[%s2 + $0x9c] sm:$0xf]
  %v992 = vld [vmem:[%s2 + $0xa0] sm:$0xf]
  %v993 = vld [vmem:[%s2 + $0xa4] sm:$0xf]
  %v994 = vld [vmem:[%s2 + $0xa8] sm:$0xf]
  %v995 = vld [vmem:[%s2 + $0xac] sm:$0xf]
  %v996 = vld [vmem:[%s2 + $0xb0] sm:$0xf]
  %v997 = vld [vmem:[%s2 + $0xb4] sm:$0xf]
  %v998 = vld [vmem:[%s2 + $0xb8] sm:$0xf]
  %v999 = vld [vmem:[%s2 + $0xbc] sm:$0xf]
  %v1000 = vld [vmem:[%s2 + $0xc0] sm:$0xf]
  %v1050 = vunpack.c.l.b16 %v952
  %v1051 = vunpack.c.l.b16 %v953
  %v1052 = vunpack.c.l.b16 %v954
  %v1053 = vunpack.c.l.b16 %v955
  %v1054 = vunpack.c.l.b16 %v956
  %v1055 = vunpack.c.l.b16 %v957
  %v1056 = vunpack.c.l.b16 %v958
  %v1057 = vunpack.c.l.b16 %v959
  %v1058 = vunpack.c.l.b16 %v960
  %v1059 = vunpack.c.l.b16 %v961
  %v1060 = vunpack.c.l.b16 %v962
  %v1061 = vunpack.c.l.b16 %v963
  %v1062 = vunpack.c.l.b16 %v964
  %v1063 = vunpack.c.l.b16 %v965
  %v1064 = vunpack.c.l.b16 %v966
  %v1065 = vunpack.c.l.b16 %v967
  %v1066 = vunpack.c.l.b16 %v968
  %v1067 = vunpack.c.l.b16 %v969
  %v1068 = vunpack.c.l.b16 %v970
  %v1069 = vunpack.c.l.b16 %v971
  %v1070 = vunpack.c.l.b16 %v972
  %v1071 = vunpack.c.l.b16 %v973
  %v1072 = vunpack.c.l.b16 %v974
  %v1073 = vunpack.c.l.b16 %v975
  %v1074 = vunpack.c.l.b16 %v976
  %v1075 = vunpack.c.l.b16 %v977
  %v1076 = vunpack.c.l.b16 %v978
  %v1077 = vunpack.c.l.b16 %v979
  %v1078 = vunpack.c.l.b16 %v980
  %v1079 = vunpack.c.l.b16 %v981
  %v1080 = vunpack.c.l.b16 %v982
  %v1081 = vunpack.c.l.b16 %v983
  %v1082 = vunpack.c.l.b16 %v984
  %v1083 = vunpack.c.l.b16 %v985
  %v1084 = vunpack.c.l.b16 %v986
  %v1085 = vunpack.c.l.b16 %v987
  %v1086 = vunpack.c.l.b16 %v988
  %v1087 = vunpack.c.l.b16 %v989
  %v1088 = vunpack.c.l.b16 %v990
  %v1089 = vunpack.c.l.b16 %v991
  %v1090 = vunpack.c.l.b16 %v992
  %v1091 = vunpack.c.l.b16 %v993
  %v1092 = vunpack.c.l.b16 %v994
  %v1093 = vunpack.c.l.b16 %v995
  %v1094 = vunpack.c.l.b16 %v996
  %v1095 = vunpack.c.l.b16 %v997
  %v1096 = vunpack.c.l.b16 %v998
  %v1097 = vunpack.c.l.b16 %v999
  %v1098 = vunpack.c.l.b16 %v1000
  %v1099 = vpack.c.b16 %v1051, %v1050
  %v1100 = vpack.c.b16 %v1053, %v1052
  %v1101 = vpack.c.b16 %v1055, %v1054
  %v1102 = vpack.c.b16 %v1057, %v1056
  %v1103 = vpack.c.b16 %v1059, %v1058
  %v1104 = vpack.c.b16 %v1061, %v1060
  %v1105 = vpack.c.b16 %v1063, %v1062
  %v1106 = vpack.c.b16 %v1065, %v1064
  %v1107 = vpack.c.b16 %v1067, %v1066
  %v1108 = vpack.c.b16 %v1069, %v1068
  %v1109 = vpack.c.b16 %v1071, %v1070
  %v1110 = vpack.c.b16 %v1073, %v1072
  %v1111 = vpack.c.b16 %v1075, %v1074
  %v1112 = vpack.c.b16 %v1077, %v1076
  %v1113 = vpack.c.b16 %v1079, %v1078
  %v1114 = vpack.c.b16 %v1081, %v1080
  %v1115 = vpack.c.b16 %v1083, %v1082
  %v1116 = vpack.c.b16 %v1085, %v1084
  %v1117 = vpack.c.b16 %v1087, %v1086
  %v1118 = vpack.c.b16 %v1089, %v1088
  %v1119 = vpack.c.b16 %v1091, %v1090
  %v1120 = vpack.c.b16 %v1093, %v1092
  %v1121 = vpack.c.b16 %v1095, %v1094
  %v1122 = vpack.c.b16 %v1097, %v1096
  %v1123 = vpack.c.b16 %v1098, %v1098
  %v1125 = vsel %vm216, %v1099, 0
  %v1128 = vsel %vm216, %v1100, 0
  %v1131 = vsel %vm216, %v1101, 0
  %v1134 = vsel %vm216, %v1102, 0
  %v1137 = vsel %vm216, %v1103, 0
  %v1140 = vsel %vm216, %v1104, 0
  %v1143 = vsel %vm216, %v1105, 0
  %v1146 = vsel %vm216, %v1106, 0
  %v1149 = vsel %vm216, %v1107, 0
  %v1152 = vsel %vm216, %v1108, 0
  %v1155 = vsel %vm216, %v1109, 0
  %v1158 = vsel %vm216, %v1110, 0
  %v1161 = vsel %vm216, %v1111, 0
  %v1164 = vsel %vm216, %v1112, 0
  %v1167 = vsel %vm216, %v1113, 0
  %v1170 = vsel %vm216, %v1114, 0
  %v1173 = vsel %vm216, %v1115, 0
  %v1176 = vsel %vm216, %v1116, 0
  %v1179 = vsel %vm216, %v1117, 0
  %v1182 = vsel %vm216, %v1118, 0
  %v1185 = vsel %vm216, %v1119, 0
  %v1188 = vsel %vm216, %v1120, 0
  %v1191 = vsel %vm216, %v1121, 0
  %v1194 = vsel %vm216, %v1122, 0
  %v1197 = vsel %vm216, %v1123, 0
  %1199 = vmatpush.bf16.msra.mxu0 0
  %1200 = vmatpush.bf16.msra.mxu0 0
  %1201 = vmatpush.bf16.msra.mxu0 0
  %1202 = vmatpush.bf16.msra.mxu0 0
  %1203 = vmatpush.bf16.msra.mxu0 0
  %1204 = vmatpush.bf16.msra.mxu0 0
  %1205 = vmatpush.bf16.msra.mxu0 %v213
  %1206 = vmatpush.bf16.msra.mxu0 %v212
  %1207 = vmatmul.bf16.gmra.mxu0 %v1125
  %v1208 = vpop.f32.mrf.mxu0
  %v1209 = vadd.f32 %v79, %v1208
  %v1210 = vpop.f32.mrf.mxu0
  %v1211 = vadd.f32 %v79, %v1210
  %1212 = vmatmul.bf16.gmra.mxu0 %v1128
  %v1213 = vpop.f32.mrf.mxu0
  %v1214 = vadd.f32 %v79, %v1213
  %v1215 = vpop.f32.mrf.mxu0
  %v1216 = vadd.f32 %v79, %v1215
  %1217 = vmatmul.bf16.gmra.mxu0 %v1131
  %v1218 = vpop.f32.mrf.mxu0
  %v1219 = vadd.f32 %v79, %v1218
  %v1220 = vpop.f32.mrf.mxu0
  %v1221 = vadd.f32 %v79, %v1220
  %1222 = vmatmul.bf16.gmra.mxu0 %v1134
  %v1223 = vpop.f32.mrf.mxu0
  %v1224 = vadd.f32 %v79, %v1223
  %v1225 = vpop.f32.mrf.mxu0
  %v1226 = vadd.f32 %v79, %v1225
  %1227 = vmatmul.bf16.gmra.mxu0 %v1137
  %v1228 = vpop.f32.mrf.mxu0
  %v1229 = vadd.f32 %v79, %v1228
  %v1230 = vpop.f32.mrf.mxu0
  %v1231 = vadd.f32 %v79, %v1230
  %1232 = vmatmul.bf16.gmra.mxu0 %v1140
  %v1233 = vpop.f32.mrf.mxu0
  %v1234 = vadd.f32 %v79, %v1233
  %v1235 = vpop.f32.mrf.mxu0
  %v1236 = vadd.f32 %v79, %v1235
  %1237 = vmatmul.bf16.gmra.mxu0 %v1143
  %v1238 = vpop.f32.mrf.mxu0
  %v1239 = vadd.f32 %v79, %v1238
  %v1240 = vpop.f32.mrf.mxu0
  %v1241 = vadd.f32 %v79, %v1240
  %1242 = vmatmul.bf16.gmra.mxu0 %v1146
  %v1243 = vpop.f32.mrf.mxu0
  %v1244 = vadd.f32 %v79, %v1243
  %v1245 = vpop.f32.mrf.mxu0
  %v1246 = vadd.f32 %v79, %v1245
  %1247 = vmatmul.bf16.gmra.mxu0 %v1149
  %v1248 = vpop.f32.mrf.mxu0
  %v1249 = vadd.f32 %v79, %v1248
  %v1250 = vpop.f32.mrf.mxu0
  %v1251 = vadd.f32 %v79, %v1250
  %1252 = vmatmul.bf16.gmra.mxu0 %v1152
  %v1253 = vpop.f32.mrf.mxu0
  %v1254 = vadd.f32 %v79, %v1253
  %v1255 = vpop.f32.mrf.mxu0
  %v1256 = vadd.f32 %v79, %v1255
  %1257 = vmatmul.bf16.gmra.mxu0 %v1155
  %v1258 = vpop.f32.mrf.mxu0
  %v1259 = vadd.f32 %v79, %v1258
  %v1260 = vpop.f32.mrf.mxu0
  %v1261 = vadd.f32 %v79, %v1260
  %1262 = vmatmul.bf16.gmra.mxu0 %v1158
  %v1263 = vpop.f32.mrf.mxu0
  %v1264 = vadd.f32 %v79, %v1263
  %v1265 = vpop.f32.mrf.mxu0
  %v1266 = vadd.f32 %v79, %v1265
  %1267 = vmatmul.bf16.gmra.mxu0 %v1161
  %v1268 = vpop.f32.mrf.mxu0
  %v1269 = vadd.f32 %v79, %v1268
  %v1270 = vpop.f32.mrf.mxu0
  %v1271 = vadd.f32 %v79, %v1270
  %1272 = vmatmul.bf16.gmra.mxu0 %v1164
  %v1273 = vpop.f32.mrf.mxu0
  %v1274 = vadd.f32 %v79, %v1273
  %v1275 = vpop.f32.mrf.mxu0
  %v1276 = vadd.f32 %v79, %v1275
  %1277 = vmatmul.bf16.gmra.mxu0 %v1167
  %v1278 = vpop.f32.mrf.mxu0
  %v1279 = vadd.f32 %v79, %v1278
  %v1280 = vpop.f32.mrf.mxu0
  %v1281 = vadd.f32 %v79, %v1280
  %1282 = vmatmul.bf16.gmra.mxu0 %v1170
  %v1283 = vpop.f32.mrf.mxu0
  %v1284 = vadd.f32 %v79, %v1283
  %v1285 = vpop.f32.mrf.mxu0
  %v1286 = vadd.f32 %v79, %v1285
  %1287 = vmatmul.bf16.gmra.mxu0 %v1173
  %v1288 = vpop.f32.mrf.mxu0
  %v1289 = vadd.f32 %v79, %v1288
  %v1290 = vpop.f32.mrf.mxu0
  %v1291 = vadd.f32 %v79, %v1290
  %1292 = vmatmul.bf16.gmra.mxu0 %v1176
  %v1293 = vpop.f32.mrf.mxu0
  %v1294 = vadd.f32 %v79, %v1293
  %v1295 = vpop.f32.mrf.mxu0
  %v1296 = vadd.f32 %v79, %v1295
  %1297 = vmatmul.bf16.gmra.mxu0 %v1179
  %v1298 = vpop.f32.mrf.mxu0
  %v1299 = vadd.f32 %v79, %v1298
  %v1300 = vpop.f32.mrf.mxu0
  %v1301 = vadd.f32 %v79, %v1300
  %1302 = vmatmul.bf16.gmra.mxu0 %v1182
  %v1303 = vpop.f32.mrf.mxu0
  %v1304 = vadd.f32 %v79, %v1303
  %v1305 = vpop.f32.mrf.mxu0
  %v1306 = vadd.f32 %v79, %v1305
  %1307 = vmatmul.bf16.gmra.mxu0 %v1185
  %v1308 = vpop.f32.mrf.mxu0
  %v1309 = vadd.f32 %v79, %v1308
  %v1310 = vpop.f32.mrf.mxu0
  %v1311 = vadd.f32 %v79, %v1310
  %1312 = vmatmul.bf16.gmra.mxu0 %v1188
  %v1313 = vpop.f32.mrf.mxu0
  %v1314 = vadd.f32 %v79, %v1313
  %v1315 = vpop.f32.mrf.mxu0
  %v1316 = vadd.f32 %v79, %v1315
  %1317 = vmatmul.bf16.gmra.mxu0 %v1191
  %v1318 = vpop.f32.mrf.mxu0
  %v1319 = vadd.f32 %v79, %v1318
  %v1320 = vpop.f32.mrf.mxu0
  %v1321 = vadd.f32 %v79, %v1320
  %1322 = vmatmul.bf16.gmra.mxu0 %v1194
  %v1323 = vpop.f32.mrf.mxu0
  %v1324 = vadd.f32 %v79, %v1323
  %v1325 = vpop.f32.mrf.mxu0
  %v1326 = vadd.f32 %v79, %v1325
  %1327 = vmatmul.bf16.gmra.mxu0 %v1197
  %v1328 = vpop.f32.mrf.mxu0
  %v1329 = vadd.f32 %v79, %v1328
  %v1330 = vpop.f32.mrf.mxu0
  %1331 = vdwg.mxu0
  %v1332 = vtanh.pop %v1209
  %v1333 = vtanh.pop %v1211
  %v1334 = vtanh.pop %v1214
  %v1335 = vtanh.pop %v1216
  %v1336 = vtanh.pop %v1219
  %v1337 = vtanh.pop %v1221
  %v1338 = vtanh.pop %v1224
  %v1339 = vtanh.pop %v1226
  %v1340 = vtanh.pop %v1229
  %v1341 = vtanh.pop %v1231
  %v1342 = vtanh.pop %v1234
  %v1343 = vtanh.pop %v1236
  %v1344 = vtanh.pop %v1239
  %v1345 = vtanh.pop %v1241
  %v1346 = vtanh.pop %v1244
  %v1347 = vtanh.pop %v1246
  %v1348 = vtanh.pop %v1249
  %v1349 = vtanh.pop %v1251
  %v1350 = vtanh.pop %v1254
  %v1351 = vtanh.pop %v1256
  %v1352 = vtanh.pop %v1259
  %v1353 = vtanh.pop %v1261
  %v1354 = vtanh.pop %v1264
  %v1355 = vtanh.pop %v1266
  %v1356 = vtanh.pop %v1269
  %v1357 = vtanh.pop %v1271
  %v1358 = vtanh.pop %v1274
  %v1359 = vtanh.pop %v1276
  %v1360 = vtanh.pop %v1279
  %v1361 = vtanh.pop %v1281
  %v1362 = vtanh.pop %v1284
  %v1363 = vtanh.pop %v1286
  %v1364 = vtanh.pop %v1289
  %v1365 = vtanh.pop %v1291
  %v1366 = vtanh.pop %v1294
  %v1367 = vtanh.pop %v1296
  %v1368 = vtanh.pop %v1299
  %v1369 = vtanh.pop %v1301
  %v1370 = vtanh.pop %v1304
  %v1371 = vtanh.pop %v1306
  %v1372 = vtanh.pop %v1309
  %v1373 = vtanh.pop %v1311
  %v1374 = vtanh.pop %v1314
  %v1375 = vtanh.pop %v1316
  %v1376 = vtanh.pop %v1319
  %v1377 = vtanh.pop %v1321
  %v1378 = vtanh.pop %v1324
  %v1379 = vtanh.pop %v1326
  %v1380 = vtanh.pop %v1329
  %v1381 = vld [vmem:[%s3] sm:$0xf]
  %v1382 = vld [vmem:[%s3 + $0x4] sm:$0xf]
  %v1383 = vld [vmem:[%s3 + $0x8] sm:$0xf]
  %v1384 = vld [vmem:[%s3 + $0xc] sm:$0xf]
  %v1385 = vld [vmem:[%s3 + $0x10] sm:$0xf]
  %v1386 = vld [vmem:[%s3 + $0x14] sm:$0xf]
  %v1387 = vld [vmem:[%s3 + $0x18] sm:$0xf]
  %v1388 = vld [vmem:[%s3 + $0x1c] sm:$0xf]
  %v1389 = vld [vmem:[%s3 + $0x20] sm:$0xf]
  %v1390 = vld [vmem:[%s3 + $0x24] sm:$0xf]
  %v1391 = vld [vmem:[%s3 + $0x28] sm:$0xf]
  %v1392 = vld [vmem:[%s3 + $0x2c] sm:$0xf]
  %v1393 = vld [vmem:[%s3 + $0x30] sm:$0xf]
  %v1394 = vld [vmem:[%s3 + $0x34] sm:$0xf]
  %v1395 = vld [vmem:[%s3 + $0x38] sm:$0xf]
  %v1396 = vld [vmem:[%s3 + $0x3c] sm:$0xf]
  %v1397 = vld [vmem:[%s3 + $0x40] sm:$0xf]
  %v1398 = vld [vmem:[%s3 + $0x44] sm:$0xf]
  %v1399 = vld [vmem:[%s3 + $0x48] sm:$0xf]
  %v1400 = vld [vmem:[%s3 + $0x4c] sm:$0xf]
  %v1401 = vld [vmem:[%s3 + $0x50] sm:$0xf]
  %v1402 = vld [vmem:[%s3 + $0x54] sm:$0xf]
  %v1403 = vld [vmem:[%s3 + $0x58] sm:$0xf]
  %v1404 = vld [vmem:[%s3 + $0x5c] sm:$0xf]
  %v1405 = vld [vmem:[%s3 + $0x60] sm:$0xf]
  %v1406 = vld [vmem:[%s3 + $0x64] sm:$0xf]
  %v1407 = vld [vmem:[%s3 + $0x68] sm:$0xf]
  %v1408 = vld [vmem:[%s3 + $0x6c] sm:$0xf]
  %v1409 = vld [vmem:[%s3 + $0x70] sm:$0xf]
  %v1410 = vld [vmem:[%s3 + $0x74] sm:$0xf]
  %v1411 = vld [vmem:[%s3 + $0x78] sm:$0xf]
  %v1412 = vld [vmem:[%s3 + $0x7c] sm:$0xf]
  %v1413 = vld [vmem:[%s3 + $0x80] sm:$0xf]
  %v1414 = vld [vmem:[%s3 + $0x84] sm:$0xf]
  %v1415 = vld [vmem:[%s3 + $0x88] sm:$0xf]
  %v1416 = vld [vmem:[%s3 + $0x8c] sm:$0xf]
  %v1417 = vld [vmem:[%s3 + $0x90] sm:$0xf]
  %v1418 = vld [vmem:[%s3 + $0x94] sm:$0xf]
  %v1419 = vld [vmem:[%s3 + $0x98] sm:$0xf]
  %v1420 = vld [vmem:[%s3 + $0x9c] sm:$0xf]
  %v1421 = vld [vmem:[%s3 + $0xa0] sm:$0xf]
  %v1422 = vld [vmem:[%s3 + $0xa4] sm:$0xf]
  %v1423 = vld [vmem:[%s3 + $0xa8] sm:$0xf]
  %v1424 = vld [vmem:[%s3 + $0xac] sm:$0xf]
  %v1425 = vld [vmem:[%s3 + $0xb0] sm:$0xf]
  %v1426 = vld [vmem:[%s3 + $0xb4] sm:$0xf]
  %v1427 = vld [vmem:[%s3 + $0xb8] sm:$0xf]
  %v1428 = vld [vmem:[%s3 + $0xbc] sm:$0xf]
  %v1429 = vld [vmem:[%s3 + $0xc0] sm:$0xf]
  %v1479 = vunpack.c.l.b16 %v1381
  %v1480 = vunpack.c.l.b16 %v1382
  %v1481 = vunpack.c.l.b16 %v1383
  %v1482 = vunpack.c.l.b16 %v1384
  %v1483 = vunpack.c.l.b16 %v1385
  %v1484 = vunpack.c.l.b16 %v1386
  %v1485 = vunpack.c.l.b16 %v1387
  %v1486 = vunpack.c.l.b16 %v1388
  %v1487 = vunpack.c.l.b16 %v1389
  %v1488 = vunpack.c.l.b16 %v1390
  %v1489 = vunpack.c.l.b16 %v1391
  %v1490 = vunpack.c.l.b16 %v1392
  %v1491 = vunpack.c.l.b16 %v1393
  %v1492 = vunpack.c.l.b16 %v1394
  %v1493 = vunpack.c.l.b16 %v1395
  %v1494 = vunpack.c.l.b16 %v1396
  %v1495 = vunpack.c.l.b16 %v1397
  %v1496 = vunpack.c.l.b16 %v1398
  %v1497 = vunpack.c.l.b16 %v1399
  %v1498 = vunpack.c.l.b16 %v1400
  %v1499 = vunpack.c.l.b16 %v1401
  %v1500 = vunpack.c.l.b16 %v1402
  %v1501 = vunpack.c.l.b16 %v1403
  %v1502 = vunpack.c.l.b16 %v1404
  %v1503 = vunpack.c.l.b16 %v1405
  %v1504 = vunpack.c.l.b16 %v1406
  %v1505 = vunpack.c.l.b16 %v1407
  %v1506 = vunpack.c.l.b16 %v1408
  %v1507 = vunpack.c.l.b16 %v1409
  %v1508 = vunpack.c.l.b16 %v1410
  %v1509 = vunpack.c.l.b16 %v1411
  %v1510 = vunpack.c.l.b16 %v1412
  %v1511 = vunpack.c.l.b16 %v1413
  %v1512 = vunpack.c.l.b16 %v1414
  %v1513 = vunpack.c.l.b16 %v1415
  %v1514 = vunpack.c.l.b16 %v1416
  %v1515 = vunpack.c.l.b16 %v1417
  %v1516 = vunpack.c.l.b16 %v1418
  %v1517 = vunpack.c.l.b16 %v1419
  %v1518 = vunpack.c.l.b16 %v1420
  %v1519 = vunpack.c.l.b16 %v1421
  %v1520 = vunpack.c.l.b16 %v1422
  %v1521 = vunpack.c.l.b16 %v1423
  %v1522 = vunpack.c.l.b16 %v1424
  %v1523 = vunpack.c.l.b16 %v1425
  %v1524 = vunpack.c.l.b16 %v1426
  %v1525 = vunpack.c.l.b16 %v1427
  %v1526 = vunpack.c.l.b16 %v1428
  %v1527 = vunpack.c.l.b16 %v1429
  %v1528 = vpack.c.b16 %v1480, %v1479
  %v1529 = vpack.c.b16 %v1482, %v1481
  %v1530 = vpack.c.b16 %v1484, %v1483
  %v1531 = vpack.c.b16 %v1486, %v1485
  %v1532 = vpack.c.b16 %v1488, %v1487
  %v1533 = vpack.c.b16 %v1490, %v1489
  %v1534 = vpack.c.b16 %v1492, %v1491
  %v1535 = vpack.c.b16 %v1494, %v1493
  %v1536 = vpack.c.b16 %v1496, %v1495
  %v1537 = vpack.c.b16 %v1498, %v1497
  %v1538 = vpack.c.b16 %v1500, %v1499
  %v1539 = vpack.c.b16 %v1502, %v1501
  %v1540 = vpack.c.b16 %v1504, %v1503
  %v1541 = vpack.c.b16 %v1506, %v1505
  %v1542 = vpack.c.b16 %v1508, %v1507
  %v1543 = vpack.c.b16 %v1510, %v1509
  %v1544 = vpack.c.b16 %v1512, %v1511
  %v1545 = vpack.c.b16 %v1514, %v1513
  %v1546 = vpack.c.b16 %v1516, %v1515
  %v1547 = vpack.c.b16 %v1518, %v1517
  %v1548 = vpack.c.b16 %v1520, %v1519
  %v1549 = vpack.c.b16 %v1522, %v1521
  %v1550 = vpack.c.b16 %v1524, %v1523
  %v1551 = vpack.c.b16 %v1526, %v1525
  %v1552 = vpack.c.b16 %v1527, %v1527
  %v1554 = vsel %vm216, %v1528, 0
  %v1557 = vsel %vm216, %v1529, 0
  %v1560 = vsel %vm216, %v1530, 0
  %v1563 = vsel %vm216, %v1531, 0
  %v1566 = vsel %vm216, %v1532, 0
  %v1569 = vsel %vm216, %v1533, 0
  %v1572 = vsel %vm216, %v1534, 0
  %v1575 = vsel %vm216, %v1535, 0
  %v1578 = vsel %vm216, %v1536, 0
  %v1581 = vsel %vm216, %v1537, 0
  %v1584 = vsel %vm216, %v1538, 0
  %v1587 = vsel %vm216, %v1539, 0
  %v1590 = vsel %vm216, %v1540, 0
  %v1593 = vsel %vm216, %v1541, 0
  %v1596 = vsel %vm216, %v1542, 0
  %v1599 = vsel %vm216, %v1543, 0
  %v1602 = vsel %vm216, %v1544, 0
  %v1605 = vsel %vm216, %v1545, 0
  %v1608 = vsel %vm216, %v1546, 0
  %v1611 = vsel %vm216, %v1547, 0
  %v1614 = vsel %vm216, %v1548, 0
  %v1617 = vsel %vm216, %v1549, 0
  %v1620 = vsel %vm216, %v1550, 0
  %v1623 = vsel %vm216, %v1551, 0
  %v1626 = vsel %vm216, %v1552, 0
  %1628 = vmatpush.bf16.msra.mxu0 0
  %1629 = vmatpush.bf16.msra.mxu0 0
  %1630 = vmatpush.bf16.msra.mxu0 0
  %1631 = vmatpush.bf16.msra.mxu0 0
  %1632 = vmatpush.bf16.msra.mxu0 0
  %1633 = vmatpush.bf16.msra.mxu0 0
  %1634 = vmatpush.bf16.msra.mxu0 %v213
  %1635 = vmatpush.bf16.msra.mxu0 %v212
  %1636 = vmatmul.bf16.gmra.mxu0 %v1554
  %v1637 = vpop.f32.mrf.mxu0
  %v1638 = vadd.f32 %v79, %v1637
  %v1639 = vpop.f32.mrf.mxu0
  %v1640 = vadd.f32 %v79, %v1639
  %1641 = vmatmul.bf16.gmra.mxu0 %v1557
  %v1642 = vpop.f32.mrf.mxu0
  %v1643 = vadd.f32 %v79, %v1642
  %v1644 = vpop.f32.mrf.mxu0
  %v1645 = vadd.f32 %v79, %v1644
  %1646 = vmatmul.bf16.gmra.mxu0 %v1560
  %v1647 = vpop.f32.mrf.mxu0
  %v1648 = vadd.f32 %v79, %v1647
  %v1649 = vpop.f32.mrf.mxu0
  %v1650 = vadd.f32 %v79, %v1649
  %1651 = vmatmul.bf16.gmra.mxu0 %v1563
  %v1652 = vpop.f32.mrf.mxu0
  %v1653 = vadd.f32 %v79, %v1652
  %v1654 = vpop.f32.mrf.mxu0
  %v1655 = vadd.f32 %v79, %v1654
  %1656 = vmatmul.bf16.gmra.mxu0 %v1566
  %v1657 = vpop.f32.mrf.mxu0
  %v1658 = vadd.f32 %v79, %v1657
  %v1659 = vpop.f32.mrf.mxu0
  %v1660 = vadd.f32 %v79, %v1659
  %1661 = vmatmul.bf16.gmra.mxu0 %v1569
  %v1662 = vpop.f32.mrf.mxu0
  %v1663 = vadd.f32 %v79, %v1662
  %v1664 = vpop.f32.mrf.mxu0
  %v1665 = vadd.f32 %v79, %v1664
  %1666 = vmatmul.bf16.gmra.mxu0 %v1572
  %v1667 = vpop.f32.mrf.mxu0
  %v1668 = vadd.f32 %v79, %v1667
  %v1669 = vpop.f32.mrf.mxu0
  %v1670 = vadd.f32 %v79, %v1669
  %1671 = vmatmul.bf16.gmra.mxu0 %v1575
  %v1672 = vpop.f32.mrf.mxu0
  %v1673 = vadd.f32 %v79, %v1672
  %v1674 = vpop.f32.mrf.mxu0
  %v1675 = vadd.f32 %v79, %v1674
  %1676 = vmatmul.bf16.gmra.mxu0 %v1578
  %v1677 = vpop.f32.mrf.mxu0
  %v1678 = vadd.f32 %v79, %v1677
  %v1679 = vpop.f32.mrf.mxu0
  %v1680 = vadd.f32 %v79, %v1679
  %1681 = vmatmul.bf16.gmra.mxu0 %v1581
  %v1682 = vpop.f32.mrf.mxu0
  %v1683 = vadd.f32 %v79, %v1682
  %v1684 = vpop.f32.mrf.mxu0
  %v1685 = vadd.f32 %v79, %v1684
  %1686 = vmatmul.bf16.gmra.mxu0 %v1584
  %v1687 = vpop.f32.mrf.mxu0
  %v1688 = vadd.f32 %v79, %v1687
  %v1689 = vpop.f32.mrf.mxu0
  %v1690 = vadd.f32 %v79, %v1689
  %1691 = vmatmul.bf16.gmra.mxu0 %v1587
  %v1692 = vpop.f32.mrf.mxu0
  %v1693 = vadd.f32 %v79, %v1692
  %v1694 = vpop.f32.mrf.mxu0
  %v1695 = vadd.f32 %v79, %v1694
  %1696 = vmatmul.bf16.gmra.mxu0 %v1590
  %v1697 = vpop.f32.mrf.mxu0
  %v1698 = vadd.f32 %v79, %v1697
  %v1699 = vpop.f32.mrf.mxu0
  %v1700 = vadd.f32 %v79, %v1699
  %1701 = vmatmul.bf16.gmra.mxu0 %v1593
  %v1702 = vpop.f32.mrf.mxu0
  %v1703 = vadd.f32 %v79, %v1702
  %v1704 = vpop.f32.mrf.mxu0
  %v1705 = vadd.f32 %v79, %v1704
  %1706 = vmatmul.bf16.gmra.mxu0 %v1596
  %v1707 = vpop.f32.mrf.mxu0
  %v1708 = vadd.f32 %v79, %v1707
  %v1709 = vpop.f32.mrf.mxu0
  %v1710 = vadd.f32 %v79, %v1709
  %1711 = vmatmul.bf16.gmra.mxu0 %v1599
  %v1712 = vpop.f32.mrf.mxu0
  %v1713 = vadd.f32 %v79, %v1712
  %v1714 = vpop.f32.mrf.mxu0
  %v1715 = vadd.f32 %v79, %v1714
  %1716 = vmatmul.bf16.gmra.mxu0 %v1602
  %v1717 = vpop.f32.mrf.mxu0
  %v1718 = vadd.f32 %v79, %v1717
  %v1719 = vpop.f32.mrf.mxu0
  %v1720 = vadd.f32 %v79, %v1719
  %1721 = vmatmul.bf16.gmra.mxu0 %v1605
  %v1722 = vpop.f32.mrf.mxu0
  %v1723 = vadd.f32 %v79, %v1722
  %v1724 = vpop.f32.mrf.mxu0
  %v1725 = vadd.f32 %v79, %v1724
  %1726 = vmatmul.bf16.gmra.mxu0 %v1608
  %v1727 = vpop.f32.mrf.mxu0
  %v1728 = vadd.f32 %v79, %v1727
  %v1729 = vpop.f32.mrf.mxu0
  %v1730 = vadd.f32 %v79, %v1729
  %1731 = vmatmul.bf16.gmra.mxu0 %v1611
  %v1732 = vpop.f32.mrf.mxu0
  %v1733 = vadd.f32 %v79, %v1732
  %v1734 = vpop.f32.mrf.mxu0
  %v1735 = vadd.f32 %v79, %v1734
  %1736 = vmatmul.bf16.gmra.mxu0 %v1614
  %v1737 = vpop.f32.mrf.mxu0
  %v1738 = vadd.f32 %v79, %v1737
  %v1739 = vpop.f32.mrf.mxu0
  %v1740 = vadd.f32 %v79, %v1739
  %1741 = vmatmul.bf16.gmra.mxu0 %v1617
  %v1742 = vpop.f32.mrf.mxu0
  %v1743 = vadd.f32 %v79, %v1742
  %v1744 = vpop.f32.mrf.mxu0
  %v1745 = vadd.f32 %v79, %v1744
  %1746 = vmatmul.bf16.gmra.mxu0 %v1620
  %v1747 = vpop.f32.mrf.mxu0
  %v1748 = vadd.f32 %v79, %v1747
  %v1749 = vpop.f32.mrf.mxu0
  %v1750 = vadd.f32 %v79, %v1749
  %1751 = vmatmul.bf16.gmra.mxu0 %v1623
  %v1752 = vpop.f32.mrf.mxu0
  %v1753 = vadd.f32 %v79, %v1752
  %v1754 = vpop.f32.mrf.mxu0
  %v1755 = vadd.f32 %v79, %v1754
  %1756 = vmatmul.bf16.gmra.mxu0 %v1626
  %v1757 = vpop.f32.mrf.mxu0
  %v1758 = vadd.f32 %v79, %v1757
  %v1759 = vpop.f32.mrf.mxu0
  %1760 = vdwg.mxu0
  %v1761 = vtanh.pop %v1638
  %v1762 = vtanh.pop %v1640
  %v1763 = vtanh.pop %v1643
  %v1764 = vtanh.pop %v1645
  %v1765 = vtanh.pop %v1648
  %v1766 = vtanh.pop %v1650
  %v1767 = vtanh.pop %v1653
  %v1768 = vtanh.pop %v1655
  %v1769 = vtanh.pop %v1658
  %v1770 = vtanh.pop %v1660
  %v1771 = vtanh.pop %v1663
  %v1772 = vtanh.pop %v1665
  %v1773 = vtanh.pop %v1668
  %v1774 = vtanh.pop %v1670
  %v1775 = vtanh.pop %v1673
  %v1776 = vtanh.pop %v1675
  %v1777 = vtanh.pop %v1678
  %v1778 = vtanh.pop %v1680
  %v1779 = vtanh.pop %v1683
  %v1780 = vtanh.pop %v1685
  %v1781 = vtanh.pop %v1688
  %v1782 = vtanh.pop %v1690
  %v1783 = vtanh.pop %v1693
  %v1784 = vtanh.pop %v1695
  %v1785 = vtanh.pop %v1698
  %v1786 = vtanh.pop %v1700
  %v1787 = vtanh.pop %v1703
  %v1788 = vtanh.pop %v1705
  %v1789 = vtanh.pop %v1708
  %v1790 = vtanh.pop %v1710
  %v1791 = vtanh.pop %v1713
  %v1792 = vtanh.pop %v1715
  %v1793 = vtanh.pop %v1718
  %v1794 = vtanh.pop %v1720
  %v1795 = vtanh.pop %v1723
  %v1796 = vtanh.pop %v1725
  %v1797 = vtanh.pop %v1728
  %v1798 = vtanh.pop %v1730
  %v1799 = vtanh.pop %v1733
  %v1800 = vtanh.pop %v1735
  %v1801 = vtanh.pop %v1738
  %v1802 = vtanh.pop %v1740
  %v1803 = vtanh.pop %v1743
  %v1804 = vtanh.pop %v1745
  %v1805 = vtanh.pop %v1748
  %v1806 = vtanh.pop %v1750
  %v1807 = vtanh.pop %v1753
  %v1808 = vtanh.pop %v1755
  %v1809 = vtanh.pop %v1758
  %v1810 = vmax.f32 %v1332, %v1761
  %v1811 = vmax.f32 %v1333, %v1762
  %v1812 = vmax.f32 %v1334, %v1763
  %v1813 = vmax.f32 %v1335, %v1764
  %v1814 = vmax.f32 %v1336, %v1765
  %v1815 = vmax.f32 %v1337, %v1766
  %v1816 = vmax.f32 %v1338, %v1767
  %v1817 = vmax.f32 %v1339, %v1768
  %v1818 = vmax.f32 %v1340, %v1769
  %v1819 = vmax.f32 %v1341, %v1770
  %v1820 = vmax.f32 %v1342, %v1771
  %v1821 = vmax.f32 %v1343, %v1772
  %v1822 = vmax.f32 %v1344, %v1773
  %v1823 = vmax.f32 %v1345, %v1774
  %v1824 = vmax.f32 %v1346, %v1775
  %v1825 = vmax.f32 %v1347, %v1776
  %v1826 = vmax.f32 %v1348, %v1777
  %v1827 = vmax.f32 %v1349, %v1778
  %v1828 = vmax.f32 %v1350, %v1779
  %v1829 = vmax.f32 %v1351, %v1780
  %v1830 = vmax.f32 %v1352, %v1781
  %v1831 = vmax.f32 %v1353, %v1782
  %v1832 = vmax.f32 %v1354, %v1783
  %v1833 = vmax.f32 %v1355, %v1784
  %v1834 = vmax.f32 %v1356, %v1785
  %v1835 = vmax.f32 %v1357, %v1786
  %v1836 = vmax.f32 %v1358, %v1787
  %v1837 = vmax.f32 %v1359, %v1788
  %v1838 = vmax.f32 %v1360, %v1789
  %v1839 = vmax.f32 %v1361, %v1790
  %v1840 = vmax.f32 %v1362, %v1791
  %v1841 = vmax.f32 %v1363, %v1792
  %v1842 = vmax.f32 %v1364, %v1793
  %v1843 = vmax.f32 %v1365, %v1794
  %v1844 = vmax.f32 %v1366, %v1795
  %v1845 = vmax.f32 %v1367, %v1796
  %v1846 = vmax.f32 %v1368, %v1797
  %v1847 = vmax.f32 %v1369, %v1798
  %v1848 = vmax.f32 %v1370, %v1799
  %v1849 = vmax.f32 %v1371, %v1800
  %v1850 = vmax.f32 %v1372, %v1801
  %v1851 = vmax.f32 %v1373, %v1802
  %v1852 = vmax.f32 %v1374, %v1803
  %v1853 = vmax.f32 %v1375, %v1804
  %v1854 = vmax.f32 %v1376, %v1805
  %v1855 = vmax.f32 %v1377, %v1806
  %v1856 = vmax.f32 %v1378, %v1807
  %v1857 = vmax.f32 %v1379, %v1808
  %v1858 = vmax.f32 %v1380, %v1809
  %v1859 = vmax.f32 %v903, %v1810
  %v1860 = vmax.f32 %v904, %v1811
  %v1861 = vmax.f32 %v905, %v1812
  %v1862 = vmax.f32 %v906, %v1813
  %v1863 = vmax.f32 %v907, %v1814
  %v1864 = vmax.f32 %v908, %v1815
  %v1865 = vmax.f32 %v909, %v1816
  %v1866 = vmax.f32 %v910, %v1817
  %v1867 = vmax.f32 %v911, %v1818
  %v1868 = vmax.f32 %v912, %v1819
  %v1869 = vmax.f32 %v913, %v1820
  %v1870 = vmax.f32 %v914, %v1821
  %v1871 = vmax.f32 %v915, %v1822
  %v1872 = vmax.f32 %v916, %v1823
  %v1873 = vmax.f32 %v917, %v1824
  %v1874 = vmax.f32 %v918, %v1825
  %v1875 = vmax.f32 %v919, %v1826
  %v1876 = vmax.f32 %v920, %v1827
  %v1877 = vmax.f32 %v921, %v1828
  %v1878 = vmax.f32 %v922, %v1829
  %v1879 = vmax.f32 %v923, %v1830
  %v1880 = vmax.f32 %v924, %v1831
  %v1881 = vmax.f32 %v925, %v1832
  %v1882 = vmax.f32 %v926, %v1833
  %v1883 = vmax.f32 %v927, %v1834
  %v1884 = vmax.f32 %v928, %v1835
  %v1885 = vmax.f32 %v929, %v1836
  %v1886 = vmax.f32 %v930, %v1837
  %v1887 = vmax.f32 %v931, %v1838
  %v1888 = vmax.f32 %v932, %v1839
  %v1889 = vmax.f32 %v933, %v1840
  %v1890 = vmax.f32 %v934, %v1841
  %v1891 = vmax.f32 %v935, %v1842
  %v1892 = vmax.f32 %v936, %v1843
  %v1893 = vmax.f32 %v937, %v1844
  %v1894 = vmax.f32 %v938, %v1845
  %v1895 = vmax.f32 %v939, %v1846
  %v1896 = vmax.f32 %v940, %v1847
  %v1897 = vmax.f32 %v941, %v1848
  %v1898 = vmax.f32 %v942, %v1849
  %v1899 = vmax.f32 %v943, %v1850
  %v1900 = vmax.f32 %v944, %v1851
  %v1901 = vmax.f32 %v945, %v1852
  %v1902 = vmax.f32 %v946, %v1853
  %v1903 = vmax.f32 %v947, %v1854
  %v1904 = vmax.f32 %v948, %v1855
  %v1905 = vmax.f32 %v949, %v1856
  %v1906 = vmax.f32 %v950, %v1857
  %v1907 = vmax.f32 %v951, %v1858
  %v1908 = vpack.c.bf16 %v1859, %v1859
  %v1909 = vpack.c.bf16 %v1860, %v1860
  %v1910 = vpack.c.bf16 %v1861, %v1861
  %v1911 = vpack.c.bf16 %v1862, %v1862
  %v1912 = vpack.c.bf16 %v1863, %v1863
  %v1913 = vpack.c.bf16 %v1864, %v1864
  %v1914 = vpack.c.bf16 %v1865, %v1865
  %v1915 = vpack.c.bf16 %v1866, %v1866
  %v1916 = vpack.c.bf16 %v1867, %v1867
  %v1917 = vpack.c.bf16 %v1868, %v1868
  %v1918 = vpack.c.bf16 %v1869, %v1869
  %v1919 = vpack.c.bf16 %v1870, %v1870
  %v1920 = vpack.c.bf16 %v1871, %v1871
  %v1921 = vpack.c.bf16 %v1872, %v1872
  %v1922 = vpack.c.bf16 %v1873, %v1873
  %v1923 = vpack.c.bf16 %v1874, %v1874
  %v1924 = vpack.c.bf16 %v1875, %v1875
  %v1925 = vpack.c.bf16 %v1876, %v1876
  %v1926 = vpack.c.bf16 %v1877, %v1877
  %v1927 = vpack.c.bf16 %v1878, %v1878
  %v1928 = vpack.c.bf16 %v1879, %v1879
  %v1929 = vpack.c.bf16 %v1880, %v1880
  %v1930 = vpack.c.bf16 %v1881, %v1881
  %v1931 = vpack.c.bf16 %v1882, %v1882
  %v1932 = vpack.c.bf16 %v1883, %v1883
  %v1933 = vpack.c.bf16 %v1884, %v1884
  %v1934 = vpack.c.bf16 %v1885, %v1885
  %v1935 = vpack.c.bf16 %v1886, %v1886
  %v1936 = vpack.c.bf16 %v1887, %v1887
  %v1937 = vpack.c.bf16 %v1888, %v1888
  %v1938 = vpack.c.bf16 %v1889, %v1889
  %v1939 = vpack.c.bf16 %v1890, %v1890
  %v1940 = vpack.c.bf16 %v1891, %v1891
  %v1941 = vpack.c.bf16 %v1892, %v1892
  %v1942 = vpack.c.bf16 %v1893, %v1893
  %v1943 = vpack.c.bf16 %v1894, %v1894
  %v1944 = vpack.c.bf16 %v1895, %v1895
  %v1945 = vpack.c.bf16 %v1896, %v1896
  %v1946 = vpack.c.bf16 %v1897, %v1897
  %v1947 = vpack.c.bf16 %v1898, %v1898
  %v1948 = vpack.c.bf16 %v1899, %v1899
  %v1949 = vpack.c.bf16 %v1900, %v1900
  %v1950 = vpack.c.bf16 %v1901, %v1901
  %v1951 = vpack.c.bf16 %v1902, %v1902
  %v1952 = vpack.c.bf16 %v1903, %v1903
  %v1953 = vpack.c.bf16 %v1904, %v1904
  %v1954 = vpack.c.bf16 %v1905, %v1905
  %v1955 = vpack.c.bf16 %v1906, %v1906
  %v1956 = vpack.c.bf16 %v1907, %v1907
  %vm1957 = vcmask 44032
  %1958 = vst.msk [vmem:[%s6] sm:$0xf] %vm1957, %v1908
  %1959 = vst.msk [vmem:[%s6 + $0x4] sm:$0xf] %vm1957, %v1909
  %1960 = vst.msk [vmem:[%s6 + $0x8] sm:$0xf] %vm1957, %v1910
  %1961 = vst.msk [vmem:[%s6 + $0xc] sm:$0xf] %vm1957, %v1911
  %1962 = vst.msk [vmem:[%s6 + $0x10] sm:$0xf] %vm1957, %v1912
  %1963 = vst.msk [vmem:[%s6 + $0x14] sm:$0xf] %vm1957, %v1913
  %1964 = vst.msk [vmem:[%s6 + $0x18] sm:$0xf] %vm1957, %v1914
  %1965 = vst.msk [vmem:[%s6 + $0x1c] sm:$0xf] %vm1957, %v1915
  %1966 = vst.msk [vmem:[%s6 + $0x20] sm:$0xf] %vm1957, %v1916
  %1967 = vst.msk [vmem:[%s6 + $0x24] sm:$0xf] %vm1957, %v1917
  %1968 = vst.msk [vmem:[%s6 + $0x28] sm:$0xf] %vm1957, %v1918
  %1969 = vst.msk [vmem:[%s6 + $0x2c] sm:$0xf] %vm1957, %v1919
  %1970 = vst.msk [vmem:[%s6 + $0x30] sm:$0xf] %vm1957, %v1920
  %1971 = vst.msk [vmem:[%s6 + $0x34] sm:$0xf] %vm1957, %v1921
  %1972 = vst.msk [vmem:[%s6 + $0x38] sm:$0xf] %vm1957, %v1922
  %1973 = vst.msk [vmem:[%s6 + $0x3c] sm:$0xf] %vm1957, %v1923
  %1974 = vst.msk [vmem:[%s6 + $0x40] sm:$0xf] %vm1957, %v1924
  %1975 = vst.msk [vmem:[%s6 + $0x44] sm:$0xf] %vm1957, %v1925
  %1976 = vst.msk [vmem:[%s6 + $0x48] sm:$0xf] %vm1957, %v1926
  %1977 = vst.msk [vmem:[%s6 + $0x4c] sm:$0xf] %vm1957, %v1927
  %1978 = vst.msk [vmem:[%s6 + $0x50] sm:$0xf] %vm1957, %v1928
  %1979 = vst.msk [vmem:[%s6 + $0x54] sm:$0xf] %vm1957, %v1929
  %1980 = vst.msk [vmem:[%s6 + $0x58] sm:$0xf] %vm1957, %v1930
  %1981 = vst.msk [vmem:[%s6 + $0x5c] sm:$0xf] %vm1957, %v1931
  %1982 = vst.msk [vmem:[%s6 + $0x60] sm:$0xf] %vm1957, %v1932
  %1983 = vst.msk [vmem:[%s6 + $0x64] sm:$0xf] %vm1957, %v1933
  %1984 = vst.msk [vmem:[%s6 + $0x68] sm:$0xf] %vm1957, %v1934
  %1985 = vst.msk [vmem:[%s6 + $0x6c] sm:$0xf] %vm1957, %v1935
  %1986 = vst.msk [vmem:[%s6 + $0x70] sm:$0xf] %vm1957, %v1936
  %1987 = vst.msk [vmem:[%s6 + $0x74] sm:$0xf] %vm1957, %v1937
  %1988 = vst.msk [vmem:[%s6 + $0x78] sm:$0xf] %vm1957, %v1938
  %1989 = vst.msk [vmem:[%s6 + $0x7c] sm:$0xf] %vm1957, %v1939
  %1990 = vst.msk [vmem:[%s6 + $0x80] sm:$0xf] %vm1957, %v1940
  %1991 = vst.msk [vmem:[%s6 + $0x84] sm:$0xf] %vm1957, %v1941
  %1992 = vst.msk [vmem:[%s6 + $0x88] sm:$0xf] %vm1957, %v1942
  %1993 = vst.msk [vmem:[%s6 + $0x8c] sm:$0xf] %vm1957, %v1943
  %1994 = vst.msk [vmem:[%s6 + $0x90] sm:$0xf] %vm1957, %v1944
  %1995 = vst.msk [vmem:[%s6 + $0x94] sm:$0xf] %vm1957, %v1945
  %1996 = vst.msk [vmem:[%s6 + $0x98] sm:$0xf] %vm1957, %v1946
  %1997 = vst.msk [vmem:[%s6 + $0x9c] sm:$0xf] %vm1957, %v1947
  %1998 = vst.msk [vmem:[%s6 + $0xa0] sm:$0xf] %vm1957, %v1948
  %1999 = vst.msk [vmem:[%s6 + $0xa4] sm:$0xf] %vm1957, %v1949
  %2000 = vst.msk [vmem:[%s6 + $0xa8] sm:$0xf] %vm1957, %v1950
  %2001 = vst.msk [vmem:[%s6 + $0xac] sm:$0xf] %vm1957, %v1951
  %2002 = vst.msk [vmem:[%s6 + $0xb0] sm:$0xf] %vm1957, %v1952
  %2003 = vst.msk [vmem:[%s6 + $0xb4] sm:$0xf] %vm1957, %v1953
  %2004 = vst.msk [vmem:[%s6 + $0xb8] sm:$0xf] %vm1957, %v1954
  %2005 = vst.msk [vmem:[%s6 + $0xbc] sm:$0xf] %vm1957, %v1955
  %2006 = vst.msk [vmem:[%s6 + $0xc0] sm:$0xf] %vm1957, %v1956
  // Predicated region
  $region26: #{lenet_forward.3} parent=0 // pred_check
    _
  $region27: #{lenet_forward.3} parent=0 // pred_check_branch
    %2008 = sbr.rel (0) target = $region29
  $region28: #{lenet_forward.3} parent=0 // pred_region
    _
  $region29: #{lenet_forward.3} parent=0 // pred_fallthru
    _
  // Predicated region
  $region30: #{lenet_forward.3} parent=0 // pred_check
    _
  $region31: #{lenet_forward.3} parent=0 // pred_check_branch
    %2010 = sbr.rel (0) target = $region33
  $region32: #{lenet_forward.3} parent=0 // pred_region
    _
  $region33: #{lenet_forward.3} parent=0 // pred_fallthru
    _

// kernel: lenet_forward.4
$region0: #{lenet_forward.4}
  #allocation0 [shape = 'u32[]', space=smem, size = 0x4, offset = 0x4, fixed_abs, tag = 'smem constant byte address 0x4 - core index']
  #allocation1 [shape = 'u32[72,128]{1,0:T(1,128)}', space=vmem, size = 0x9000, scoped, tag = 'internal scratch']
  %s0 = inlined_call_operand.vmem [shape: bf16[50,160], index: 0, kind: input, shape index: {}]
  %s1 = inlined_call_operand.vmem [shape: bf16[50,160], index: 1, kind: input, shape index: {}]
  %s2 = inlined_call_operand.vmem [shape: bf16[50,160], index: 2, kind: input, shape index: {}]
  %s3 = inlined_call_operand.vmem [shape: bf16[50,160], index: 3, kind: input, shape index: {}]
  %s4 = inlined_call_operand.vmem [shape: bf16[160,16], index: 4, kind: input, shape index: {}]
  %s5 = inlined_call_operand.vmem [shape: f32[1,16], index: 5, kind: input, shape index: {}]
  %s6 = inlined_call_operand.vmem [shape: bf16[50,16], index: 6, kind: output, shape index: {}]
  %s7 = sld [smem:[#allocation0]]
  $region34: #{lenet_forward.4} parent=0
    _
  %s9 = ssub.s32 1, %s7
  %s10 = scalar_select 0, %s9, %s7
  // Predicated region
  $region2: #{lenet_forward.4} parent=0 // pred_check
    _
  $region3: #{lenet_forward.4} parent=0 // pred_check_branch
    %12 = sbr.rel (0) target = $region5
  $region4: #{lenet_forward.4} parent=0 // pred_region
    _
  $region5: #{lenet_forward.4} parent=0 // pred_fallthru
    _
  // Predicated region
  $region6: #{lenet_forward.4} parent=0 // pred_check
    _
  $region7: #{lenet_forward.4} parent=0 // pred_check_branch
    %14 = sbr.rel (0) target = $region9
  $region8: #{lenet_forward.4} parent=0 // pred_region
    _
  $region9: #{lenet_forward.4} parent=0 // pred_fallthru
    _
  // Predicated region
  $region10: #{lenet_forward.4} parent=0 // pred_check
    _
  $region11: #{lenet_forward.4} parent=0 // pred_check_branch
    %16 = sbr.rel (0) target = $region13
  $region12: #{lenet_forward.4} parent=0 // pred_region
    _
  $region13: #{lenet_forward.4} parent=0 // pred_fallthru
    _
  // Predicated region
  $region14: #{lenet_forward.4} parent=0 // pred_check
    _
  $region15: #{lenet_forward.4} parent=0 // pred_check_branch
    %18 = sbr.rel (0) target = $region17
  $region16: #{lenet_forward.4} parent=0 // pred_region
    _
  $region17: #{lenet_forward.4} parent=0 // pred_fallthru
    _
  // Predicated region
  $region18: #{lenet_forward.4} parent=0 // pred_check
    _
  $region19: #{lenet_forward.4} parent=0 // pred_check_branch
    %20 = sbr.rel (0) target = $region21
  $region20: #{lenet_forward.4} parent=0 // pred_region
    _
  $region21: #{lenet_forward.4} parent=0 // pred_fallthru
    _
  // Predicated region
  $region22: #{lenet_forward.4} parent=0 // pred_check
    _
  $region23: #{lenet_forward.4} parent=0 // pred_check_branch
    %22 = sbr.rel (0) target = $region25
  $region24: #{lenet_forward.4} parent=0 // pred_region
    _
  $region25: #{lenet_forward.4} parent=0 // pred_fallthru
    _
  %v24 = vld [vmem:[%s4] sm:$0xf]
  %v25 = vld [vmem:[%s4 + $0x4] sm:$0xf]
  %v26 = vld [vmem:[%s4 + $0x8] sm:$0xf]
  %v27 = vld [vmem:[%s4 + $0xc] sm:$0xf]
  %v28 = vld [vmem:[%s4 + $0x10] sm:$0xf]
  %v29 = vld [vmem:[%s4 + $0x14] sm:$0xf]
  %v30 = vld [vmem:[%s4 + $0x18] sm:$0xf]
  %v31 = vld [vmem:[%s4 + $0x1c] sm:$0xf]
  %v32 = vld [vmem:[%s4 + $0x20] sm:$0xf]
  %v33 = vld [vmem:[%s4 + $0x24] sm:$0xf]
  %v34 = vld [vmem:[%s4 + $0x28] sm:$0xf]
  %v35 = vld [vmem:[%s4 + $0x2c] sm:$0xf]
  %v36 = vld [vmem:[%s4 + $0x30] sm:$0xf]
  %v37 = vld [vmem:[%s4 + $0x34] sm:$0xf]
  %v38 = vld [vmem:[%s4 + $0x38] sm:$0xf]
  %v39 = vld [vmem:[%s4 + $0x3c] sm:$0xf]
  %v40 = vld [vmem:[%s4 + $0x40] sm:$0xf]
  %v41 = vld [vmem:[%s4 + $0x44] sm:$0xf]
  %v42 = vld [vmem:[%s4 + $0x48] sm:$0xf]
  %v43 = vld [vmem:[%s4 + $0x4c] sm:$0xf]
  %v44 = vld [vmem:[%s5] sm:$0x1]
  %v45 = vld [vmem:[%s0] sm:$0xff]
  %v46 = vld [vmem:[%s0 + $0x8] sm:$0xff]
  %v47 = vld [vmem:[%s0 + $0x10] sm:$0xff]
  %v48 = vld [vmem:[%s0 + $0x18] sm:$0xff]
  %v49 = vld [vmem:[%s0 + $0x20] sm:$0xff]
  %v50 = vld [vmem:[%s0 + $0x28] sm:$0xff]
  %v51 = vld [vmem:[%s0 + $0x30] sm:$0x11]
  %v53 = vperm.slane %v44, 0
  %v62 = vunpack.c.l.b16 %v45
  %v63 = vunpack.c.h.b16 %v45
  %v64 = vunpack.c.l.b16 %v46
  %v65 = vunpack.c.h.b16 %v46
  %v66 = vunpack.c.l.b16 %v47
  %v67 = vunpack.c.h.b16 %v47
  %v68 = vunpack.c.l.b16 %v48
  %v69 = vunpack.c.h.b16 %v48
  %v70 = vunpack.c.l.b16 %v49
  %v71 = vunpack.c.h.b16 %v49
  %v72 = vunpack.c.l.b16 %v50
  %v73 = vunpack.c.h.b16 %v50
  %v74 = vunpack.c.l.b16 %v51
  %v75 = vunpack.c.h.b16 %v51
  %v76 = vpack.c.b16 %v64, %v62
  %v77 = vpack.c.b16 %v65, %v63
  %v78 = vpack.c.b16 %v68, %v66
  %v79 = vpack.c.b16 %v69, %v67
  %v80 = vpack.c.b16 %v72, %v70
  %v81 = vpack.c.b16 %v73, %v71
  %v82 = vpack.c.b16 %v74, %v74
  %v83 = vpack.c.b16 %v75, %v75
  %v108 = vunpack.c.l.b16 %v24
  %v109 = vunpack.c.l.b16 %v25
  %v110 = vunpack.c.l.b16 %v26
  %v111 = vunpack.c.l.b16 %v27
  %v112 = vunpack.c.l.b16 %v28
  %v113 = vunpack.c.l.b16 %v29
  %v114 = vunpack.c.l.b16 %v30
  %v115 = vunpack.c.l.b16 %v31
  %v116 = vunpack.c.l.b16 %v32
  %v117 = vunpack.c.l.b16 %v33
  %v118 = vunpack.c.l.b16 %v34
  %v119 = vunpack.c.l.b16 %v35
  %v120 = vunpack.c.l.b16 %v36
  %v121 = vunpack.c.l.b16 %v37
  %v122 = vunpack.c.l.b16 %v38
  %v123 = vunpack.c.l.b16 %v39
  %v124 = vunpack.c.l.b16 %v40
  %v125 = vunpack.c.l.b16 %v41
  %v126 = vunpack.c.l.b16 %v42
  %v127 = vunpack.c.l.b16 %v43
  %v128 = vpack.c.b16 %v109, %v108
  %v129 = vpack.c.b16 %v111, %v110
  %v130 = vpack.c.b16 %v113, %v112
  %v131 = vpack.c.b16 %v115, %v114
  %v132 = vpack.c.b16 %v117, %v116
  %v133 = vpack.c.b16 %v119, %v118
  %v134 = vpack.c.b16 %v121, %v120
  %v135 = vpack.c.b16 %v123, %v122
  %v136 = vpack.c.b16 %v125, %v124
  %v137 = vpack.c.b16 %v127, %v126
  %vm148 = vcmask 261120
  %v150 = vsel %vm148, %v77, 0
  %v153 = vsel %vm148, %v79, 0
  %v156 = vsel %vm148, %v81, 0
  %v159 = vsel %vm148, %v83, 0
  %161 = vmatpush.bf16.msra.mxu0 %v135
  %162 = vmatpush.bf16.msra.mxu0 %v134
  %163 = vmatpush.bf16.msra.mxu0 %v133
  %164 = vmatpush.bf16.msra.mxu0 %v132
  %165 = vmatpush.bf16.msra.mxu0 %v131
  %166 = vmatpush.bf16.msra.mxu0 %v130
  %167 = vmatpush.bf16.msra.mxu0 %v129
  %168 = vmatpush.bf16.msra.mxu0 %v128
  %169 = vmatmul.bf16.gmra.mxu0 %v76
  %v170 = vpop.f32.mrf.mxu0
  %v171 = vadd.f32 %v53, %v170
  %v172 = vpop.f32.mrf.mxu0
  %v173 = vadd.f32 %v53, %v172
  %174 = vmatmul.bf16.gmra.mxu0 %v78
  %v175 = vpop.f32.mrf.mxu0
  %v176 = vadd.f32 %v53, %v175
  %v177 = vpop.f32.mrf.mxu0
  %v178 = vadd.f32 %v53, %v177
  %179 = vmatmul.bf16.gmra.mxu0 %v80
  %v180 = vpop.f32.mrf.mxu0
  %v181 = vadd.f32 %v53, %v180
  %v182 = vpop.f32.mrf.mxu0
  %v183 = vadd.f32 %v53, %v182
  %184 = vmatmul.bf16.gmra.mxu0 %v82
  %v185 = vpop.f32.mrf.mxu0
  %v186 = vadd.f32 %v53, %v185
  %v187 = vpop.f32.mrf.mxu0
  %188 = vdwg.mxu0
  %189 = vmatpush.bf16.msra.mxu0 0
  %190 = vmatpush.bf16.msra.mxu0 0
  %191 = vmatpush.bf16.msra.mxu0 0
  %192 = vmatpush.bf16.msra.mxu0 0
  %193 = vmatpush.bf16.msra.mxu0 0
  %194 = vmatpush.bf16.msra.mxu0 0
  %195 = vmatpush.bf16.msra.mxu0 %v137
  %196 = vmatpush.bf16.msra.mxu0 %v136
  %197 = vmatmul.bf16.gmra.mxu0 %v150
  %v198 = vpop.f32.mrf.mxu0
  %v199 = vadd.f32 %v171, %v198
  %v200 = vpop.f32.mrf.mxu0
  %v201 = vadd.f32 %v173, %v200
  %202 = vmatmul.bf16.gmra.mxu0 %v153
  %v203 = vpop.f32.mrf.mxu0
  %v204 = vadd.f32 %v176, %v203
  %v205 = vpop.f32.mrf.mxu0
  %v206 = vadd.f32 %v178, %v205
  %207 = vmatmul.bf16.gmra.mxu0 %v156
  %v208 = vpop.f32.mrf.mxu0
  %v209 = vadd.f32 %v181, %v208
  %v210 = vpop.f32.mrf.mxu0
  %v211 = vadd.f32 %v183, %v210
  %212 = vmatmul.bf16.gmra.mxu0 %v159
  %v213 = vpop.f32.mrf.mxu0
  %v214 = vadd.f32 %v186, %v213
  %v215 = vpop.f32.mrf.mxu0
  %216 = vdwg.mxu0
  %v217 = vtanh.pop %v199
  %v218 = vtanh.pop %v201
  %v219 = vtanh.pop %v204
  %v220 = vtanh.pop %v206
  %v221 = vtanh.pop %v209
  %v222 = vtanh.pop %v211
  %v223 = vtanh.pop %v214
  %v224 = vld [vmem:[%s1] sm:$0xff]
  %v225 = vld [vmem:[%s1 + $0x8] sm:$0xff]
  %v226 = vld [vmem:[%s1 + $0x10] sm:$0xff]
  %v227 = vld [vmem:[%s1 + $0x18] sm:$0xff]
  %v228 = vld [vmem:[%s1 + $0x20] sm:$0xff]
  %v229 = vld [vmem:[%s1 + $0x28] sm:$0xff]
  %v230 = vld [vmem:[%s1 + $0x30] sm:$0x11]
  %v238 = vunpack.c.l.b16 %v224
  %v239 = vunpack.c.h.b16 %v224
  %v240 = vunpack.c.l.b16 %v225
  %v241 = vunpack.c.h.b16 %v225
  %v242 = vunpack.c.l.b16 %v226
  %v243 = vunpack.c.h.b16 %v226
  %v244 = vunpack.c.l.b16 %v227
  %v245 = vunpack.c.h.b16 %v227
  %v246 = vunpack.c.l.b16 %v228
  %v247 = vunpack.c.h.b16 %v228
  %v248 = vunpack.c.l.b16 %v229
  %v249 = vunpack.c.h.b16 %v229
  %v250 = vunpack.c.l.b16 %v230
  %v251 = vunpack.c.h.b16 %v230
  %v252 = vpack.c.b16 %v240, %v238
  %v253 = vpack.c.b16 %v241, %v239
  %v254 = vpack.c.b16 %v244, %v242
  %v255 = vpack.c.b16 %v245, %v243
  %v256 = vpack.c.b16 %v248, %v246
  %v257 = vpack.c.b16 %v249, %v247
  %v258 = vpack.c.b16 %v250, %v250
  %v259 = vpack.c.b16 %v251, %v251
  %v265 = vsel %vm148, %v253, 0
  %v268 = vsel %vm148, %v255, 0
  %v271 = vsel %vm148, %v257, 0
  %v274 = vsel %vm148, %v259, 0
  %276 = vmatpush.bf16.msra.mxu0 %v135
  %277 = vmatpush.bf16.msra.mxu0 %v134
  %278 = vmatpush.bf16.msra.mxu0 %v133
  %279 = vmatpush.bf16.msra.mxu0 %v132
  %280 = vmatpush.bf16.msra.mxu0 %v131
  %281 = vmatpush.bf16.msra.mxu0 %v130
  %282 = vmatpush.bf16.msra.mxu0 %v129
  %283 = vmatpush.bf16.msra.mxu0 %v128
  %284 = vmatmul.bf16.gmra.mxu0 %v252
  %v285 = vpop.f32.mrf.mxu0
  %v286 = vadd.f32 %v53, %v285
  %v287 = vpop.f32.mrf.mxu0
  %v288 = vadd.f32 %v53, %v287
  %289 = vmatmul.bf16.gmra.mxu0 %v254
  %v290 = vpop.f32.mrf.mxu0
  %v291 = vadd.f32 %v53, %v290
  %v292 = vpop.f32.mrf.mxu0
  %v293 = vadd.f32 %v53, %v292
  %294 = vmatmul.bf16.gmra.mxu0 %v256
  %v295 = vpop.f32.mrf.mxu0
  %v296 = vadd.f32 %v53, %v295
  %v297 = vpop.f32.mrf.mxu0
  %v298 = vadd.f32 %v53, %v297
  %299 = vmatmul.bf16.gmra.mxu0 %v258
  %v300 = vpop.f32.mrf.mxu0
  %v301 = vadd.f32 %v53, %v300
  %v302 = vpop.f32.mrf.mxu0
  %303 = vdwg.mxu0
  %304 = vmatpush.bf16.msra.mxu0 0
  %305 = vmatpush.bf16.msra.mxu0 0
  %306 = vmatpush.bf16.msra.mxu0 0
  %307 = vmatpush.bf16.msra.mxu0 0
  %308 = vmatpush.bf16.msra.mxu0 0
  %309 = vmatpush.bf16.msra.mxu0 0
  %310 = vmatpush.bf16.msra.mxu0 %v137
  %311 = vmatpush.bf16.msra.mxu0 %v136
  %312 = vmatmul.bf16.gmra.mxu0 %v265
  %v313 = vpop.f32.mrf.mxu0
  %v314 = vadd.f32 %v286, %v313
  %v315 = vpop.f32.mrf.mxu0
  %v316 = vadd.f32 %v288, %v315
  %317 = vmatmul.bf16.gmra.mxu0 %v268
  %v318 = vpop.f32.mrf.mxu0
  %v319 = vadd.f32 %v291, %v318
  %v320 = vpop.f32.mrf.mxu0
  %v321 = vadd.f32 %v293, %v320
  %322 = vmatmul.bf16.gmra.mxu0 %v271
  %v323 = vpop.f32.mrf.mxu0
  %v324 = vadd.f32 %v296, %v323
  %v325 = vpop.f32.mrf.mxu0
  %v326 = vadd.f32 %v298, %v325
  %327 = vmatmul.bf16.gmra.mxu0 %v274
  %v328 = vpop.f32.mrf.mxu0
  %v329 = vadd.f32 %v301, %v328
  %v330 = vpop.f32.mrf.mxu0
  %331 = vdwg.mxu0
  %v332 = vtanh.pop %v314
  %v333 = vtanh.pop %v316
  %v334 = vtanh.pop %v319
  %v335 = vtanh.pop %v321
  %v336 = vtanh.pop %v324
  %v337 = vtanh.pop %v326
  %v338 = vtanh.pop %v329
  %v339 = vmax.f32 %v217, %v332
  %v340 = vmax.f32 %v218, %v333
  %v341 = vmax.f32 %v219, %v334
  %v342 = vmax.f32 %v220, %v335
  %v343 = vmax.f32 %v221, %v336
  %v344 = vmax.f32 %v222, %v337
  %v345 = vmax.f32 %v223, %v338
  %v346 = vld [vmem:[%s2] sm:$0xff]
  %v347 = vld [vmem:[%s2 + $0x8] sm:$0xff]
  %v348 = vld [vmem:[%s2 + $0x10] sm:$0xff]
  %v349 = vld [vmem:[%s2 + $0x18] sm:$0xff]
  %v350 = vld [vmem:[%s2 + $0x20] sm:$0xff]
  %v351 = vld [vmem:[%s2 + $0x28] sm:$0xff]
  %v352 = vld [vmem:[%s2 + $0x30] sm:$0x11]
  %v360 = vunpack.c.l.b16 %v346
  %v361 = vunpack.c.h.b16 %v346
  %v362 = vunpack.c.l.b16 %v347
  %v363 = vunpack.c.h.b16 %v347
  %v364 = vunpack.c.l.b16 %v348
  %v365 = vunpack.c.h.b16 %v348
  %v366 = vunpack.c.l.b16 %v349
  %v367 = vunpack.c.h.b16 %v349
  %v368 = vunpack.c.l.b16 %v350
  %v369 = vunpack.c.h.b16 %v350
  %v370 = vunpack.c.l.b16 %v351
  %v371 = vunpack.c.h.b16 %v351
  %v372 = vunpack.c.l.b16 %v352
  %v373 = vunpack.c.h.b16 %v352
  %v374 = vpack.c.b16 %v362, %v360
  %v375 = vpack.c.b16 %v363, %v361
  %v376 = vpack.c.b16 %v366, %v364
  %v377 = vpack.c.b16 %v367, %v365
  %v378 = vpack.c.b16 %v370, %v368
  %v379 = vpack.c.b16 %v371, %v369
  %v380 = vpack.c.b16 %v372, %v372
  %v381 = vpack.c.b16 %v373, %v373
  %v387 = vsel %vm148, %v375, 0
  %v390 = vsel %vm148, %v377, 0
  %v393 = vsel %vm148, %v379, 0
  %v396 = vsel %vm148, %v381, 0
  %398 = vmatpush.bf16.msra.mxu0 %v135
  %399 = vmatpush.bf16.msra.mxu0 %v134
  %400 = vmatpush.bf16.msra.mxu0 %v133
  %401 = vmatpush.bf16.msra.mxu0 %v132
  %402 = vmatpush.bf16.msra.mxu0 %v131
  %403 = vmatpush.bf16.msra.mxu0 %v130
  %404 = vmatpush.bf16.msra.mxu0 %v129
  %405 = vmatpush.bf16.msra.mxu0 %v128
  %406 = vmatmul.bf16.gmra.mxu0 %v374
  %v407 = vpop.f32.mrf.mxu0
  %v408 = vadd.f32 %v53, %v407
  %v409 = vpop.f32.mrf.mxu0
  %v410 = vadd.f32 %v53, %v409
  %411 = vmatmul.bf16.gmra.mxu0 %v376
  %v412 = vpop.f32.mrf.mxu0
  %v413 = vadd.f32 %v53, %v412
  %v414 = vpop.f32.mrf.mxu0
  %v415 = vadd.f32 %v53, %v414
  %416 = vmatmul.bf16.gmra.mxu0 %v378
  %v417 = vpop.f32.mrf.mxu0
  %v418 = vadd.f32 %v53, %v417
  %v419 = vpop.f32.mrf.mxu0
  %v420 = vadd.f32 %v53, %v419
  %421 = vmatmul.bf16.gmra.mxu0 %v380
  %v422 = vpop.f32.mrf.mxu0
  %v423 = vadd.f32 %v53, %v422
  %v424 = vpop.f32.mrf.mxu0
  %425 = vdwg.mxu0
  %426 = vmatpush.bf16.msra.mxu0 0
  %427 = vmatpush.bf16.msra.mxu0 0
  %428 = vmatpush.bf16.msra.mxu0 0
  %429 = vmatpush.bf16.msra.mxu0 0
  %430 = vmatpush.bf16.msra.mxu0 0
  %431 = vmatpush.bf16.msra.mxu0 0
  %432 = vmatpush.bf16.msra.mxu0 %v137
  %433 = vmatpush.bf16.msra.mxu0 %v136
  %434 = vmatmul.bf16.gmra.mxu0 %v387
  %v435 = vpop.f32.mrf.mxu0
  %v436 = vadd.f32 %v408, %v435
  %v437 = vpop.f32.mrf.mxu0
  %v438 = vadd.f32 %v410, %v437
  %439 = vmatmul.bf16.gmra.mxu0 %v390
  %v440 = vpop.f32.mrf.mxu0
  %v441 = vadd.f32 %v413, %v440
  %v442 = vpop.f32.mrf.mxu0
  %v443 = vadd.f32 %v415, %v442
  %444 = vmatmul.bf16.gmra.mxu0 %v393
  %v445 = vpop.f32.mrf.mxu0
  %v446 = vadd.f32 %v418, %v445
  %v447 = vpop.f32.mrf.mxu0
  %v448 = vadd.f32 %v420, %v447
  %449 = vmatmul.bf16.gmra.mxu0 %v396
  %v450 = vpop.f32.mrf.mxu0
  %v451 = vadd.f32 %v423, %v450
  %v452 = vpop.f32.mrf.mxu0
  %453 = vdwg.mxu0
  %v454 = vtanh.pop %v436
  %v455 = vtanh.pop %v438
  %v456 = vtanh.pop %v441
  %v457 = vtanh.pop %v443
  %v458 = vtanh.pop %v446
  %v459 = vtanh.pop %v448
  %v460 = vtanh.pop %v451
  %v461 = vld [vmem:[%s3] sm:$0xff]
  %v462 = vld [vmem:[%s3 + $0x8] sm:$0xff]
  %v463 = vld [vmem:[%s3 + $0x10] sm:$0xff]
  %v464 = vld [vmem:[%s3 + $0x18] sm:$0xff]
  %v465 = vld [vmem:[%s3 + $0x20] sm:$0xff]
  %v466 = vld [vmem:[%s3 + $0x28] sm:$0xff]
  %v467 = vld [vmem:[%s3 + $0x30] sm:$0x11]
  %v475 = vunpack.c.l.b16 %v461
  %v476 = vunpack.c.h.b16 %v461
  %v477 = vunpack.c.l.b16 %v462
  %v478 = vunpack.c.h.b16 %v462
  %v479 = vunpack.c.l.b16 %v463
  %v480 = vunpack.c.h.b16 %v463
  %v481 = vunpack.c.l.b16 %v464
  %v482 = vunpack.c.h.b16 %v464
  %v483 = vunpack.c.l.b16 %v465
  %v484 = vunpack.c.h.b16 %v465
  %v485 = vunpack.c.l.b16 %v466
  %v486 = vunpack.c.h.b16 %v466
  %v487 = vunpack.c.l.b16 %v467
  %v488 = vunpack.c.h.b16 %v467
  %v489 = vpack.c.b16 %v477, %v475
  %v490 = vpack.c.b16 %v478, %v476
  %v491 = vpack.c.b16 %v481, %v479
  %v492 = vpack.c.b16 %v482, %v480
  %v493 = vpack.c.b16 %v485, %v483
  %v494 = vpack.c.b16 %v486, %v484
  %v495 = vpack.c.b16 %v487, %v487
  %v496 = vpack.c.b16 %v488, %v488
  %v502 = vsel %vm148, %v490, 0
  %v505 = vsel %vm148, %v492, 0
  %v508 = vsel %vm148, %v494, 0
  %v511 = vsel %vm148, %v496, 0
  %513 = vmatpush.bf16.msra.mxu0 %v135
  %514 = vmatpush.bf16.msra.mxu0 %v134
  %515 = vmatpush.bf16.msra.mxu0 %v133
  %516 = vmatpush.bf16.msra.mxu0 %v132
  %517 = vmatpush.bf16.msra.mxu0 %v131
  %518 = vmatpush.bf16.msra.mxu0 %v130
  %519 = vmatpush.bf16.msra.mxu0 %v129
  %520 = vmatpush.bf16.msra.mxu0 %v128
  %521 = vmatmul.bf16.gmra.mxu0 %v489
  %v522 = vpop.f32.mrf.mxu0
  %v523 = vadd.f32 %v53, %v522
  %v524 = vpop.f32.mrf.mxu0
  %v525 = vadd.f32 %v53, %v524
  %526 = vmatmul.bf16.gmra.mxu0 %v491
  %v527 = vpop.f32.mrf.mxu0
  %v528 = vadd.f32 %v53, %v527
  %v529 = vpop.f32.mrf.mxu0
  %v530 = vadd.f32 %v53, %v529
  %531 = vmatmul.bf16.gmra.mxu0 %v493
  %v532 = vpop.f32.mrf.mxu0
  %v533 = vadd.f32 %v53, %v532
  %v534 = vpop.f32.mrf.mxu0
  %v535 = vadd.f32 %v53, %v534
  %536 = vmatmul.bf16.gmra.mxu0 %v495
  %v537 = vpop.f32.mrf.mxu0
  %v538 = vadd.f32 %v53, %v537
  %v539 = vpop.f32.mrf.mxu0
  %540 = vdwg.mxu0
  %541 = vmatpush.bf16.msra.mxu0 0
  %542 = vmatpush.bf16.msra.mxu0 0
  %543 = vmatpush.bf16.msra.mxu0 0
  %544 = vmatpush.bf16.msra.mxu0 0
  %545 = vmatpush.bf16.msra.mxu0 0
  %546 = vmatpush.bf16.msra.mxu0 0
  %547 = vmatpush.bf16.msra.mxu0 %v137
  %548 = vmatpush.bf16.msra.mxu0 %v136
  %549 = vmatmul.bf16.gmra.mxu0 %v502
  %v550 = vpop.f32.mrf.mxu0
  %v551 = vadd.f32 %v523, %v550
  %v552 = vpop.f32.mrf.mxu0
  %v553 = vadd.f32 %v525, %v552
  %554 = vmatmul.bf16.gmra.mxu0 %v505
  %v555 = vpop.f32.mrf.mxu0
  %v556 = vadd.f32 %v528, %v555
  %v557 = vpop.f32.mrf.mxu0
  %v558 = vadd.f32 %v530, %v557
  %559 = vmatmul.bf16.gmra.mxu0 %v508
  %v560 = vpop.f32.mrf.mxu0
  %v561 = vadd.f32 %v533, %v560
  %v562 = vpop.f32.mrf.mxu0
  %v563 = vadd.f32 %v535, %v562
  %564 = vmatmul.bf16.gmra.mxu0 %v511
  %v565 = vpop.f32.mrf.mxu0
  %v566 = vadd.f32 %v538, %v565
  %v567 = vpop.f32.mrf.mxu0
  %568 = vdwg.mxu0
  %v569 = vtanh.pop %v551
  %v570 = vtanh.pop %v553
  %v571 = vtanh.pop %v556
  %v572 = vtanh.pop %v558
  %v573 = vtanh.pop %v561
  %v574 = vtanh.pop %v563
  %v575 = vtanh.pop %v566
  %v576 = vmax.f32 %v454, %v569
  %v577 = vmax.f32 %v455, %v570
  %v578 = vmax.f32 %v456, %v571
  %v579 = vmax.f32 %v457, %v572
  %v580 = vmax.f32 %v458, %v573
  %v581 = vmax.f32 %v459, %v574
  %v582 = vmax.f32 %v460, %v575
  %v583 = vmax.f32 %v339, %v576
  %v584 = vmax.f32 %v340, %v577
  %v585 = vmax.f32 %v341, %v578
  %v586 = vmax.f32 %v342, %v579
  %v587 = vmax.f32 %v343, %v580
  %v588 = vmax.f32 %v344, %v581
  %v589 = vmax.f32 %v345, %v582
  %v590 = vpack.c.bf16 %v583, %v583
  %v591 = vpack.c.bf16 %v584, %v584
  %v592 = vpack.c.bf16 %v585, %v585
  %v593 = vpack.c.bf16 %v586, %v586
  %v594 = vpack.c.bf16 %v587, %v587
  %v595 = vpack.c.bf16 %v588, %v588
  %v596 = vpack.c.bf16 %v589, %v589
  %vm597 = vcmask 125952
  %598 = vst.msk [vmem:[%s6] sm:$0xf] %vm597, %v590
  %599 = vst.msk [vmem:[%s6 + $0x4] sm:$0xf] %vm597, %v591
  %600 = vst.msk [vmem:[%s6 + $0x8] sm:$0xf] %vm597, %v592
  %601 = vst.msk [vmem:[%s6 + $0xc] sm:$0xf] %vm597, %v593
  %602 = vst.msk [vmem:[%s6 + $0x10] sm:$0xf] %vm597, %v594
  %603 = vst.msk [vmem:[%s6 + $0x14] sm:$0xf] %vm597, %v595
  %vm604 = vcmask 122880
  %605 = vst.msk [vmem:[%s6 + $0x18] sm:$0x1] %vm604, %v596
  // Predicated region
  $region26: #{lenet_forward.4} parent=0 // pred_check
    _
  $region27: #{lenet_forward.4} parent=0 // pred_check_branch
    %607 = sbr.rel (0) target = $region29
  $region28: #{lenet_forward.4} parent=0 // pred_region
    _
  $region29: #{lenet_forward.4} parent=0 // pred_fallthru
    _
  // Predicated region
  $region30: #{lenet_forward.4} parent=0 // pred_check
    _
  $region31: #{lenet_forward.4} parent=0 // pred_check_branch
    %609 = sbr.rel (0) target = $region33
  $region32: #{lenet_forward.4} parent=0 // pred_region
    _
  $region33: #{lenet_forward.4} parent=0 // pred_fallthru
    _

// kernel: lenet_forward.5
$region0: #{lenet_forward.5}
  #allocation0 [shape = 'u32[]', space=smem, size = 0x4, offset = 0x4, fixed_abs, tag = 'smem constant byte address 0x4 - core index']
  #allocation1 [shape = 'u32[72,128]{1,0:T(1,128)}', space=vmem, size = 0x9000, scoped, tag = 'internal scratch']
  %s0 = inlined_call_operand.vmem [shape: bf16[2,400], index: 0, kind: input, shape index: {}]
  %s1 = inlined_call_operand.vmem [shape: bf16[400,128], index: 1, kind: input, shape index: {}]
  %s2 = inlined_call_operand.vmem [shape: f32[1,128], index: 2, kind: input, shape index: {}]
  %s3 = inlined_call_operand.vmem [shape: bf16[128,128], index: 3, kind: input, shape index: {}]
  %s4 = inlined_call_operand.vmem [shape: f32[1,128], index: 4, kind: input, shape index: {}]
  %s5 = inlined_call_operand.vmem [shape: bf16[128,128], index: 5, kind: input, shape index: {}]
  %s6 = inlined_call_operand.vmem [shape: f32[1,128], index: 6, kind: input, shape index: {}]
  %s7 = inlined_call_operand.hbm [shape: f32[2,128], index: 7, kind: output, shape index: {}]
  %s8 = sld [smem:[#allocation0]]
  $region38: #{lenet_forward.5} parent=0
    _
  %s10 = ssub.s32 1, %s8
  %s11 = scalar_select 0, %s10, %s8
  $region1: #{lenet_forward.5} parent=0
    #allocation2 [shape = 'u8[1024]{0}', space=vmem, size = 0x400, scoped, tag = 'output window, operand 0, single buffered']
    #allocation3 [shape = 's32[1]{0}', space=sflag, size = 0x4, scoped, tag = 'scoped memory for lenet_forward.5']
    %12 = vsyncpa [#allocation3], 0
    // Predicated region
    $region2: #{lenet_forward.5} parent=1 // pred_check
      _
    $region3: #{lenet_forward.5} parent=1 // pred_check_branch
      %14 = sbr.rel (0) target = $region5
    $region4: #{lenet_forward.5} parent=1 // pred_region
      _
    $region5: #{lenet_forward.5} parent=1 // pred_fallthru
      _
    // Predicated region
    $region6: #{lenet_forward.5} parent=1 // pred_check
      _
    $region7: #{lenet_forward.5} parent=1 // pred_check_branch
      %16 = sbr.rel (0) target = $region9
    $region8: #{lenet_forward.5} parent=1 // pred_region
      _
    $region9: #{lenet_forward.5} parent=1 // pred_fallthru
      _
    // Predicated region
    $region10: #{lenet_forward.5} parent=1 // pred_check
      _
    $region11: #{lenet_forward.5} parent=1 // pred_check_branch
      %18 = sbr.rel (0) target = $region13
    $region12: #{lenet_forward.5} parent=1 // pred_region
      _
    $region13: #{lenet_forward.5} parent=1 // pred_fallthru
      _
    // Predicated region
    $region14: #{lenet_forward.5} parent=1 // pred_check
      _
    $region15: #{lenet_forward.5} parent=1 // pred_check_branch
      %20 = sbr.rel (0) target = $region17
    $region16: #{lenet_forward.5} parent=1 // pred_region
      _
    $region17: #{lenet_forward.5} parent=1 // pred_fallthru
      _
    // Predicated region
    $region18: #{lenet_forward.5} parent=1 // pred_check
      _
    $region19: #{lenet_forward.5} parent=1 // pred_check_branch
      %22 = sbr.rel (0) target = $region21
    $region20: #{lenet_forward.5} parent=1 // pred_region
      _
    $region21: #{lenet_forward.5} parent=1 // pred_fallthru
      _
    // Predicated region
    $region22: #{lenet_forward.5} parent=1 // pred_check
      _
    $region23: #{lenet_forward.5} parent=1 // pred_check_branch
      %24 = sbr.rel (0) target = $region25
    $region24: #{lenet_forward.5} parent=1 // pred_region
      _
    $region25: #{lenet_forward.5} parent=1 // pred_fallthru
      _
    // Predicated region
    $region26: #{lenet_forward.5} parent=1 // pred_check
      _
    $region27: #{lenet_forward.5} parent=1 // pred_check_branch
      %26 = sbr.rel (0) target = $region29
    $region28: #{lenet_forward.5} parent=1 // pred_region
      _
    $region29: #{lenet_forward.5} parent=1 // pred_fallthru
      _
    %v28 = vld [vmem:[%s0] sm:$0xf]
    %v29 = vld [vmem:[%s1] sm:$0xf]
    %v30 = vld [vmem:[%s1 + $0x4] sm:$0xf]
    %v31 = vld [vmem:[%s1 + $0x8] sm:$0xf]
    %v32 = vld [vmem:[%s1 + $0xc] sm:$0xf]
    %v33 = vld [vmem:[%s1 + $0x10] sm:$0xf]
    %v34 = vld [vmem:[%s1 + $0x14] sm:$0xf]
    %v35 = vld [vmem:[%s1 + $0x18] sm:$0xf]
    %v36 = vld [vmem:[%s1 + $0x1c] sm:$0xf]
    %v37 = vld [vmem:[%s1 + $0x20] sm:$0xf]
    %v38 = vld [vmem:[%s1 + $0x24] sm:$0xf]
    %v39 = vld [vmem:[%s1 + $0x28] sm:$0xf]
    %v40 = vld [vmem:[%s1 + $0x2c] sm:$0xf]
    %v41 = vld [vmem:[%s1 + $0x30] sm:$0xf]
    %v42 = vld [vmem:[%s1 + $0x34] sm:$0xf]
    %v43 = vld [vmem:[%s1 + $0x38] sm:$0xf]
    %v44 = vld [vmem:[%s1 + $0x3c] sm:$0xf]
    %v45 = vld [vmem:[%s1 + $0x40] sm:$0xf]
    %v46 = vld [vmem:[%s1 + $0x44] sm:$0xf]
    %v47 = vld [vmem:[%s1 + $0x48] sm:$0xf]
    %v48 = vld [vmem:[%s1 + $0x4c] sm:$0xf]
    %v49 = vld [vmem:[%s1 + $0x50] sm:$0xf]
    %v50 = vld [vmem:[%s1 + $0x54] sm:$0xf]
    %v51 = vld [vmem:[%s1 + $0x58] sm:$0xf]
    %v52 = vld [vmem:[%s1 + $0x5c] sm:$0xf]
    %v53 = vld [vmem:[%s1 + $0x60] sm:$0xf]
    %v54 = vld [vmem:[%s1 + $0x64] sm:$0xf]
    %v55 = vld [vmem:[%s1 + $0x68] sm:$0xf]
    %v56 = vld [vmem:[%s1 + $0x6c] sm:$0xf]
    %v57 = vld [vmem:[%s1 + $0x70] sm:$0xf]
    %v58 = vld [vmem:[%s1 + $0x74] sm:$0xf]
    %v59 = vld [vmem:[%s1 + $0x78] sm:$0xf]
    %v60 = vld [vmem:[%s1 + $0x7c] sm:$0xf]
    %v61 = vld [vmem:[%s1 + $0x80] sm:$0xf]
    %v62 = vld [vmem:[%s1 + $0x84] sm:$0xf]
    %v63 = vld [vmem:[%s1 + $0x88] sm:$0xf]
    %v64 = vld [vmem:[%s1 + $0x8c] sm:$0xf]
    %v65 = vld [vmem:[%s1 + $0x90] sm:$0xf]
    %v66 = vld [vmem:[%s1 + $0x94] sm:$0xf]
    %v67 = vld [vmem:[%s1 + $0x98] sm:$0xf]
    %v68 = vld [vmem:[%s1 + $0x9c] sm:$0xf]
    %v69 = vld [vmem:[%s1 + $0xa0] sm:$0xf]
    %v70 = vld [vmem:[%s1 + $0xa4] sm:$0xf]
    %v71 = vld [vmem:[%s1 + $0xa8] sm:$0xf]
    %v72 = vld [vmem:[%s1 + $0xac] sm:$0xf]
    %v73 = vld [vmem:[%s1 + $0xb0] sm:$0xf]
    %v74 = vld [vmem:[%s1 + $0xb4] sm:$0xf]
    %v75 = vld [vmem:[%s1 + $0xb8] sm:$0xf]
    %v76 = vld [vmem:[%s1 + $0xbc] sm:$0xf]
    %v77 = vld [vmem:[%s1 + $0xc0] sm:$0xf]
    %v78 = vld [vmem:[%s1 + $0xc4] sm:$0xf]
    %v79 = vld [vmem:[%s2] sm:$0x1]
    %v81 = vperm.slane %v79, 0
    %84 = vst [vmem:[#allocation1] ss:$9 sm:$0xff] %v28
    %v85 = vld [vmem:[#allocation1] sm:$0xff]
    %v86 = vld [vmem:[#allocation1 + $0x9] sm:$0xff]
    %v87 = vld [vmem:[#allocation1 + $0x12] sm:$0xff]
    %v88 = vld [vmem:[#allocation1 + $0x1b] sm:$0xff]
    %v142 = vunpack.c.l.b16 %v29
    %v143 = vunpack.c.l.b16 %v30
    %v144 = vunpack.c.l.b16 %v31
    %v145 = vunpack.c.l.b16 %v32
    %v146 = vunpack.c.l.b16 %v33
    %v147 = vunpack.c.l.b16 %v34
    %v148 = vunpack.c.l.b16 %v35
    %v149 = vunpack.c.l.b16 %v36
    %v150 = vunpack.c.l.b16 %v37
    %v151 = vunpack.c.l.b16 %v38
    %v152 = vunpack.c.l.b16 %v39
    %v153 = vunpack.c.l.b16 %v40
    %v154 = vunpack.c.l.b16 %v41
    %v155 = vunpack.c.l.b16 %v42
    %v156 = vunpack.c.l.b16 %v43
    %v157 = vunpack.c.l.b16 %v44
    %v158 = vunpack.c.l.b16 %v45
    %v159 = vunpack.c.l.b16 %v46
    %v160 = vunpack.c.l.b16 %v47
    %v161 = vunpack.c.l.b16 %v48
    %v162 = vunpack.c.l.b16 %v49
    %v163 = vunpack.c.l.b16 %v50
    %v164 = vunpack.c.l.b16 %v51
    %v165 = vunpack.c.l.b16 %v52
    %v166 = vunpack.c.l.b16 %v53
    %v167 = vunpack.c.l.b16 %v54
    %v168 = vunpack.c.l.b16 %v55
    %v169 = vunpack.c.l.b16 %v56
    %v170 = vunpack.c.l.b16 %v57
    %v171 = vunpack.c.l.b16 %v58
    %v172 = vunpack.c.l.b16 %v59
    %v173 = vunpack.c.l.b16 %v60
    %v174 = vunpack.c.l.b16 %v61
    %v175 = vunpack.c.l.b16 %v62
    %v176 = vunpack.c.l.b16 %v63
    %v177 = vunpack.c.l.b16 %v64
    %v178 = vunpack.c.l.b16 %v65
    %v179 = vunpack.c.l.b16 %v66
    %v180 = vunpack.c.l.b16 %v67
    %v181 = vunpack.c.l.b16 %v68
    %v182 = vunpack.c.l.b16 %v69
    %v183 = vunpack.c.l.b16 %v70
    %v184 = vunpack.c.l.b16 %v71
    %v185 = vunpack.c.l.b16 %v72
    %v186 = vunpack.c.l.b16 %v73
    %v187 = vunpack.c.l.b16 %v74
    %v188 = vunpack.c.l.b16 %v75
    %v189 = vunpack.c.l.b16 %v76
    %v190 = vunpack.c.l.b16 %v77
    %v191 = vunpack.c.l.b16 %v78
    %v192 = vpack.c.b16 %v143, %v142
    %v193 = vpack.c.b16 %v145, %v144
    %v194 = vpack.c.b16 %v147, %v146
    %v195 = vpack.c.b16 %v149, %v148
    %v196 = vpack.c.b16 %v151, %v150
    %v197 = vpack.c.b16 %v153, %v152
    %v198 = vpack.c.b16 %v155, %v154
    %v199 = vpack.c.b16 %v157, %v156
    %v200 = vpack.c.b16 %v159, %v158
    %v201 = vpack.c.b16 %v161, %v160
    %v202 = vpack.c.b16 %v163, %v162
    %v203 = vpack.c.b16 %v165, %v164
    %v204 = vpack.c.b16 %v167, %v166
    %v205 = vpack.c.b16 %v169, %v168
    %v206 = vpack.c.b16 %v171, %v170
    %v207 = vpack.c.b16 %v173, %v172
    %v208 = vpack.c.b16 %v175, %v174
    %v209 = vpack.c.b16 %v177, %v176
    %v210 = vpack.c.b16 %v179, %v178
    %v211 = vpack.c.b16 %v181, %v180
    %v212 = vpack.c.b16 %v183, %v182
    %v213 = vpack.c.b16 %v185, %v184
    %v214 = vpack.c.b16 %v187, %v186
    %v215 = vpack.c.b16 %v189, %v188
    %v216 = vpack.c.b16 %v191, %v190
    %vm242 = vcmask 130048
    %v243 = vsel %vm242, %v88, 0
    %245 = vmatpush.bf16.msra.mxu0 %v199
    %246 = vmatpush.bf16.msra.mxu0 %v198
    %247 = vmatpush.bf16.msra.mxu0 %v197
    %248 = vmatpush.bf16.msra.mxu0 %v196
    %249 = vmatpush.bf16.msra.mxu0 %v195
    %250 = vmatpush.bf16.msra.mxu0 %v194
    %251 = vmatpush.bf16.msra.mxu0 %v193
    %252 = vmatpush.bf16.msra.mxu0 %v192
    %253 = vmatmul.bf16.gmra.mxu0 %v85
    %v254 = vpop.f32.mrf.mxu0
    %v255 = vadd.f32 %v81, %v254
    %v256 = vpop.f32.mrf.mxu0
    %257 = vdwg.mxu0
    %258 = vmatpush.bf16.msra.mxu0 %v207
    %259 = vmatpush.bf16.msra.mxu0 %v206
    %260 = vmatpush.bf16.msra.mxu0 %v205
    %261 = vmatpush.bf16.msra.mxu0 %v204
    %262 = vmatpush.bf16.msra.mxu0 %v203
    %263 = vmatpush.bf16.msra.mxu0 %v202
    %264 = vmatpush.bf16.msra.mxu0 %v201
    %265 = vmatpush.bf16.msra.mxu0 %v200
    %266 = vmatmul.bf16.gmra.mxu0 %v86
    %v267 = vpop.f32.mrf.mxu0
    %v268 = vadd.f32 %v255, %v267
    %v269 = vpop.f32.mrf.mxu0
    %270 = vdwg.mxu0
    %271 = vmatpush.bf16.msra.mxu0 %v215
    %272 = vmatpush.bf16.msra.mxu0 %v214
    %273 = vmatpush.bf16.msra.mxu0 %v213
    %274 = vmatpush.bf16.msra.mxu0 %v212
    %275 = vmatpush.bf16.msra.mxu0 %v211
    %276 = vmatpush.bf16.msra.mxu0 %v210
    %277 = vmatpush.bf16.msra.mxu0 %v209
    %278 = vmatpush.bf16.msra.mxu0 %v208
    %279 = vmatmul.bf16.gmra.mxu0 %v87
    %v280 = vpop.f32.mrf.mxu0
    %v281 = vadd.f32 %v268, %v280
    %v282 = vpop.f32.mrf.mxu0
    %283 = vdwg.mxu0
    %284 = vmatpush.bf16.msra.mxu0 0
    %285 = vmatpush.bf16.msra.mxu0 0
    %286 = vmatpush.bf16.msra.mxu0 0
    %287 = vmatpush.bf16.msra.mxu0 0
    %288 = vmatpush.bf16.msra.mxu0 0
    %289 = vmatpush.bf16.msra.mxu0 0
    %290 = vmatpush.bf16.msra.mxu0 0
    %291 = vmatpush.bf16.msra.mxu0 %v216
    %292 = vmatmul.bf16.gmra.mxu0 %v243
    %v293 = vpop.f32.mrf.mxu0
    %v294 = vadd.f32 %v281, %v293
    %v295 = vpop.f32.mrf.mxu0
    %296 = vdwg.mxu0
    %v297 = vxor.u32 %v294, 2147483648
    %v298 = vmul.f32 %v297, 1.442695
    %v299 = vpow.pop %v298
    %v300 = vadd.f32 %v299, 1.0
    %v301 = vrcp.pop %v300
    %v302 = vmul.f32 %v300, %v301
    %v303 = vsub.f32 1.0, %v302
    %v304 = vmul.f32 %v301, %v303
    %v305 = vadd.f32 %v301, %v304
    %vm306 = vweird.f32 %v300
    %vm307 = vweird.f32 %v301
    %vm308 = vmor %vm306, %vm307
    %v309 = vsel %vm308, %v301, %v305
    %v310 = vand.u32 2147483647, %v300
    %vm311 = vcmp.eq.f32.partialorder %v310, 8.507059e+37
    %v312 = vand.u32 %v300, 2147483648
    %v313 = vor.u32 1.1754944e-38, %v312
    %v314 = vsel %vm311, %v313, %v309
    %v315 = vmul.f32 1.0, %v314
    %v316 = vpack.c.bf16 %v315, %v315
    %v317 = vld [vmem:[%s3] sm:$0xf]
    %v318 = vld [vmem:[%s3 + $0x4] sm:$0xf]
    %v319 = vld [vmem:[%s3 + $0x8] sm:$0xf]
    %v320 = vld [vmem:[%s3 + $0xc] sm:$0xf]
    %v321 = vld [vmem:[%s3 + $0x10] sm:$0xf]
    %v322 = vld [vmem:[%s3 + $0x14] sm:$0xf]
    %v323 = vld [vmem:[%s3 + $0x18] sm:$0xf]
    %v324 = vld [vmem:[%s3 + $0x1c] sm:$0xf]
    %v325 = vld [vmem:[%s3 + $0x20] sm:$0xf]
    %v326 = vld [vmem:[%s3 + $0x24] sm:$0xf]
    %v327 = vld [vmem:[%s3 + $0x28] sm:$0xf]
    %v328 = vld [vmem:[%s3 + $0x2c] sm:$0xf]
    %v329 = vld [vmem:[%s3 + $0x30] sm:$0xf]
    %v330 = vld [vmem:[%s3 + $0x34] sm:$0xf]
    %v331 = vld [vmem:[%s3 + $0x38] sm:$0xf]
    %v332 = vld [vmem:[%s3 + $0x3c] sm:$0xf]
    %v333 = vld [vmem:[%s4] sm:$0x1]
    %v335 = vperm.slane %v333, 0
    %v353 = vunpack.c.l.b16 %v317
    %v354 = vunpack.c.l.b16 %v318
    %v355 = vunpack.c.l.b16 %v319
    %v356 = vunpack.c.l.b16 %v320
    %v357 = vunpack.c.l.b16 %v321
    %v358 = vunpack.c.l.b16 %v322
    %v359 = vunpack.c.l.b16 %v323
    %v360 = vunpack.c.l.b16 %v324
    %v361 = vunpack.c.l.b16 %v325
    %v362 = vunpack.c.l.b16 %v326
    %v363 = vunpack.c.l.b16 %v327
    %v364 = vunpack.c.l.b16 %v328
    %v365 = vunpack.c.l.b16 %v329
    %v366 = vunpack.c.l.b16 %v330
    %v367 = vunpack.c.l.b16 %v331
    %v368 = vunpack.c.l.b16 %v332
    %v369 = vpack.c.b16 %v354, %v353
    %v370 = vpack.c.b16 %v356, %v355
    %v371 = vpack.c.b16 %v358, %v357
    %v372 = vpack.c.b16 %v360, %v359
    %v373 = vpack.c.b16 %v362, %v361
    %v374 = vpack.c.b16 %v364, %v363
    %v375 = vpack.c.b16 %v366, %v365
    %v376 = vpack.c.b16 %v368, %v367
    %385 = vmatpush.bf16.msra.mxu0 %v376
    %386 = vmatpush.bf16.msra.mxu0 %v375
    %387 = vmatpush.bf16.msra.mxu0 %v374
    %388 = vmatpush.bf16.msra.mxu0 %v373
    %389 = vmatpush.bf16.msra.mxu0 %v372
    %390 = vmatpush.bf16.msra.mxu0 %v371
    %391 = vmatpush.bf16.msra.mxu0 %v370
    %392 = vmatpush.bf16.msra.mxu0 %v369
    %393 = vmatmul.bf16.gmra.mxu0 %v316
    %v394 = vpop.f32.mrf.mxu0
    %v395 = vadd.f32 %v335, %v394
    %v396 = vpop.f32.mrf.mxu0
    %397 = vdwg.mxu0
    %v398 = vxor.u32 %v395, 2147483648
    %v399 = vmul.f32 %v398, 1.442695
    %v400 = vpow.pop %v399
    %v401 = vadd.f32 %v400, 1.0
    %v402 = vrcp.pop %v401
    %v403 = vmul.f32 %v401, %v402
    %v404 = vsub.f32 1.0, %v403
    %v405 = vmul.f32 %v402, %v404
    %v406 = vadd.f32 %v402, %v405
    %vm407 = vweird.f32 %v401
    %vm408 = vweird.f32 %v402
    %vm409 = vmor %vm407, %vm408
    %v410 = vsel %vm409, %v402, %v406
    %v411 = vand.u32 2147483647, %v401
    %vm412 = vcmp.eq.f32.partialorder %v411, 8.507059e+37
    %v413 = vand.u32 %v401, 2147483648
    %v414 = vor.u32 1.1754944e-38, %v413
    %v415 = vsel %vm412, %v414, %v410
    %v416 = vmul.f32 1.0, %v415
    %v417 = vpack.c.bf16 %v416, %v416
    %v418 = vld [vmem:[%s5] sm:$0xf]
    %v419 = vld [vmem:[%s5 + $0x4] sm:$0xf]
    %v420 = vld [vmem:[%s5 + $0x8] sm:$0xf]
    %v421 = vld [vmem:[%s5 + $0xc] sm:$0xf]
    %v422 = vld [vmem:[%s5 + $0x10] sm:$0xf]
    %v423 = vld [vmem:[%s5 + $0x14] sm:$0xf]
    %v424 = vld [vmem:[%s5 + $0x18] sm:$0xf]
    %v425 = vld [vmem:[%s5 + $0x1c] sm:$0xf]
    %v426 = vld [vmem:[%s5 + $0x20] sm:$0xf]
    %v427 = vld [vmem:[%s5 + $0x24] sm:$0xf]
    %v428 = vld [vmem:[%s5 + $0x28] sm:$0xf]
    %v429 = vld [vmem:[%s5 + $0x2c] sm:$0xf]
    %v430 = vld [vmem:[%s5 + $0x30] sm:$0xf]
    %v431 = vld [vmem:[%s5 + $0x34] sm:$0xf]
    %v432 = vld [vmem:[%s5 + $0x38] sm:$0xf]
    %v433 = vld [vmem:[%s5 + $0x3c] sm:$0xf]
    %v434 = vld [vmem:[%s6] sm:$0x1]
    %v436 = vperm.slane %v434, 0
    %v454 = vunpack.c.l.b16 %v418
    %v455 = vunpack.c.l.b16 %v419
    %v456 = vunpack.c.l.b16 %v420
    %v457 = vunpack.c.l.b16 %v421
    %v458 = vunpack.c.l.b16 %v422
    %v459 = vunpack.c.l.b16 %v423
    %v460 = vunpack.c.l.b16 %v424
    %v461 = vunpack.c.l.b16 %v425
    %v462 = vunpack.c.l.b16 %v426
    %v463 = vunpack.c.l.b16 %v427
    %v464 = vunpack.c.l.b16 %v428
    %v465 = vunpack.c.l.b16 %v429
    %v466 = vunpack.c.l.b16 %v430
    %v467 = vunpack.c.l.b16 %v431
    %v468 = vunpack.c.l.b16 %v432
    %v469 = vunpack.c.l.b16 %v433
    %v470 = vpack.c.b16 %v455, %v454
    %v471 = vpack.c.b16 %v457, %v456
    %v472 = vpack.c.b16 %v459, %v458
    %v473 = vpack.c.b16 %v461, %v460
    %v474 = vpack.c.b16 %v463, %v462
    %v475 = vpack.c.b16 %v465, %v464
    %v476 = vpack.c.b16 %v467, %v466
    %v477 = vpack.c.b16 %v469, %v468
    %486 = vmatpush.bf16.msra.mxu0 %v477
    %487 = vmatpush.bf16.msra.mxu0 %v476
    %488 = vmatpush.bf16.msra.mxu0 %v475
    %489 = vmatpush.bf16.msra.mxu0 %v474
    %490 = vmatpush.bf16.msra.mxu0 %v473
    %491 = vmatpush.bf16.msra.mxu0 %v472
    %492 = vmatpush.bf16.msra.mxu0 %v471
    %493 = vmatpush.bf16.msra.mxu0 %v470
    %494 = vmatmul.bf16.gmra.mxu0 %v417
    %v495 = vpop.f32.mrf.mxu0
    %v496 = vadd.f32 %v436, %v495
    %v497 = vpop.f32.mrf.mxu0
    %498 = vdwg.mxu0
    %499 = vst [vmem:[#allocation2] sm:$0x3] %v496
    // Predicated region
    $region30: #{lenet_forward.5} parent=1 // pred_check
      _
    $region31: #{lenet_forward.5} parent=1 // pred_check_branch
      %501 = sbr.rel (0) target = $region33
    $region32: #{lenet_forward.5} parent=1 // pred_region
      %503 = vsyncadd [#allocation3], 0
      %s505 = sshll.u32 [#allocation2], 4
      %s506 = int_to_ptr.vmem [resolvable:$true] %s505
      %s507 = sshll.u32 %s7, 4
      %s508 = int_to_ptr.hbm [resolvable:$true] %s507
      %510 = dma.vmem_to_hbm [thread:$0]  %s506, 32, %s508, [#allocation3]
    $region33: #{lenet_forward.5} parent=1 // pred_fallthru
      _
    // Predicated region
    $region34: #{lenet_forward.5} parent=1 // pred_check
      _
    $region35: #{lenet_forward.5} parent=1 // pred_check_branch
      %512 = sbr.rel (0) target = $region37
    $region36: #{lenet_forward.5} parent=1 // pred_region
      %514 = dma.done [#allocation3], 32
    $region37: #{lenet_forward.5} parent=1 // pred_fallthru
      _
    %515 = vsyncpa [#allocation3], 1

</llo_original>
